<compile_context>
chip_gen: v6e
topology: v6e:2x2x1
jax: 0.10.0
libtpu: 0.0.40
codegen_flags: <defaults>
</compile_context>

<pallas_src>
import functools
import math

import jax
import jax.numpy as jnp
from jax.experimental import pallas as pl
from jax.experimental.pallas import tpu as pltpu

LANE = 128
SUBLANE = 8


def _round_up(v, m):
    return ((v + m - 1) // m) * m


def _vmem_limit_bytes():
    """Generation-aware scoped-VMEM budget (v5e/v6e: 128 MiB physical, v7x: 64 MiB)."""
    try:
        info = pltpu.get_tpu_info()
        cap = getattr(info, "vmem_capacity_bytes", None)
        if cap is not None:
            return 64 * 1024 * 1024 if cap >= 100 * 1024 * 1024 else 32 * 1024 * 1024
    except Exception:
        pass
    return 32 * 1024 * 1024


# --------------------------------------------------------------------------
# Kernels
# --------------------------------------------------------------------------
def _lin_kernel(x_ref, w_ref, b_ref, o_ref):
    """h = x @ Wlin + blin for one row tile; single bf16 activation output."""
    h = jnp.dot(x_ref[...], w_ref[...], preferred_element_type=jnp.float32) + b_ref[...]
    o_ref[...] = h.astype(o_ref.dtype)


def _sage_kernel(a_ref, hk_ref, hrow_ref, wf_ref, b_ref, o_ref, acc_ref, *,
                 apply_relu, hp):
    """One SAGEConv layer (+ residual) for a (row tile, K tile) grid cell.

    a_ref    : (TM, TK)   bf16 tile of the mean-normalized adjacency
    hk_ref   : (TK, Hp)   bf16 features of the K-chunk of neighbour nodes
    hrow_ref : (TM, Hp)   bf16 features of this row tile (root term + residual)
    wf_ref   : (2Hp, Hp)  bf16 fused [W_l ; W_r]
    acc_ref  : (TM, 2Hp)  f32 scratch; [:, :Hp] accumulates the mean aggregation
               across K steps, [:, Hp:] takes the root features on the last K step
               so the whole slab feeds a single fused K=2Hp MXU matmul (no concat).
    """
    @pl.when(pl.program_id(1) == 0)
    def _():
        acc_ref[...] = jnp.zeros_like(acc_ref)

    acc_ref[:, :hp] += jnp.dot(a_ref[...], hk_ref[...],
                               preferred_element_type=jnp.float32)

    @pl.when(pl.program_id(1) == pl.num_programs(1) - 1)
    def _():
        h_row = hrow_ref[...].astype(jnp.float32)
        acc_ref[:, hp:] = h_row
        conv = jnp.dot(acc_ref[...].astype(jnp.bfloat16), wf_ref[...],
                       preferred_element_type=jnp.float32) + b_ref[...]
        if apply_relu:
            conv = jnp.maximum(conv, 0.0)
        o_ref[...] = (conv + h_row).astype(o_ref.dtype)     # residual in f32


def _pool_kernel(pt_ref, x_ref, o_ref):
    """global_mean_pool accumulated over node row tiles: o += P^T_tile @ x_tile."""
    @pl.when(pl.program_id(0) == 0)
    def _():
        o_ref[...] = jnp.zeros_like(o_ref)

    o_ref[...] += jax.lax.dot_general(
        pt_ref[...], x_ref[...].astype(jnp.float32),
        dimension_numbers=(((0,), (0,)), ((), ())),
        preferred_element_type=jnp.float32,
    )


def _fused_kernel(x_ref, a_ref, pt_ref, wlin_ref, blin_ref,
                  w1f_ref, b1_ref, w2f_ref, b2_ref, o_ref):
    """Whole network (lin -> sage1 -> sage2 -> mean-pool) for graphs that fit VMEM.

    Removes three HBM round-trips of (N, H) activations and three pipeline
    prologues; residual path stays f32 end-to-end inside the kernel.
    """
    h = jnp.dot(x_ref[...], wlin_ref[...],
                preferred_element_type=jnp.float32) + blin_ref[...]

    def sage(h_f32, wf_ref_, b_ref_, relu):
        agg = jnp.dot(a_ref[...], h_f32.astype(jnp.bfloat16),
                      preferred_element_type=jnp.float32)
        fused_in = jnp.concatenate([agg, h_f32], axis=-1).astype(jnp.bfloat16)
        conv = jnp.dot(fused_in, wf_ref_[...],
                       preferred_element_type=jnp.float32) + b_ref_[...]
        if relu:
            conv = jnp.maximum(conv, 0.0)
        return conv + h_f32

    out1 = sage(h, w1f_ref, b1_ref, True)
    out2 = sage(out1, w2f_ref, b2_ref, False)
    o_ref[...] = jax.lax.dot_general(
        pt_ref[...], out2, dimension_numbers=(((0,), (0,)), ((), ())),
        preferred_element_type=jnp.float32)


# --------------------------------------------------------------------------
# Parameter / operator preparation
# --------------------------------------------------------------------------
def init_params(key, in_channels, hidden_channels):
    ks = jax.random.split(key, 8)
    scale = 0.1
    return {
        # all weights stored as [in, out] (already transposed vs. torch Linear)
        "wlin": scale * jax.random.normal(ks[0], (in_channels, hidden_channels), jnp.float32),
        "blin": scale * jax.random.normal(ks[1], (1, hidden_channels), jnp.float32),
        "wl1":  scale * jax.random.normal(ks[2], (hidden_channels, hidden_channels), jnp.float32),
        "bl1":  scale * jax.random.normal(ks[3], (1, hidden_channels), jnp.float32),
        "wr1":  scale * jax.random.normal(ks[4], (hidden_channels, hidden_channels), jnp.float32),
        "wl2":  scale * jax.random.normal(ks[5], (hidden_channels, hidden_channels), jnp.float32),
        "bl2":  scale * jax.random.normal(ks[6], (1, hidden_channels), jnp.float32),
        "wr2":  scale * jax.random.normal(ks[7], (hidden_channels, hidden_channels), jnp.float32),
    }


def prepare_params(params):
    """Pad to lane-dense (128) shapes, fuse [W_l ; W_r], cast MXU operands to bf16."""
    cin, hid = params["wlin"].shape
    cp = _round_up(cin, LANE)
    hp = _round_up(hid, LANE)

    def pad2(w, r, c):
        return jnp.zeros((r, c), jnp.float32).at[: w.shape[0], : w.shape[1]].set(w)

    def fuse(wl, wr):
        wf = jnp.zeros((2 * hp, hp), jnp.float32)
        wf = wf.at[: wl.shape[0], : wl.shape[1]].set(wl)              # neighbour (agg) part
        wf = wf.at[hp: hp + wr.shape[0], : wr.shape[1]].set(wr)       # root part
        return wf.astype(jnp.bfloat16)

    return {
        "wlin": pad2(params["wlin"], cp, hp).astype(jnp.bfloat16),
        "blin": pad2(params["blin"], 1, hp),
        "w1f": fuse(params["wl1"], params["wr1"]),
        "b1": pad2(params["bl1"], 1, hp),
        "w2f": fuse(params["wl2"], params["wr2"]),
        "b2": pad2(params["bl2"], 1, hp),
        "cin": cin, "hidden": hid, "cp": cp, "hp": hp,
    }


def build_graph_operators(edge_index, batch, n_nodes, num_graphs, n_pad, g_pad):
    """Dense row-normalized adjacency (bf16) and transposed mean-pool matrix (f32).

    Padded rows/cols are all-zero, so padded nodes never leak into real ones.
    """
    src, dst = edge_index[0], edge_index[1]
    adj = jnp.zeros((n_pad, n_pad), jnp.float32).at[dst, src].add(1.0)
    deg = jnp.sum(adj, axis=1, keepdims=True)
    a_mean = (adj / jnp.maximum(deg, 1.0)).astype(jnp.bfloat16)

    node_ids = jnp.arange(n_pad)
    b_pad = jnp.where(node_ids < n_nodes,
                      jnp.pad(batch, (0, n_pad - n_nodes)), -1)
    onehot = (b_pad[:, None] == jnp.arange(g_pad)[None, :]).astype(jnp.float32)  # (Np, Gp)
    counts = jnp.sum(onehot, axis=0, keepdims=True)
    pt_mean = onehot / jnp.maximum(counts, 1.0)                                   # (Np, Gp)
    return a_mean, pt_mean


# --------------------------------------------------------------------------
# Forward
# --------------------------------------------------------------------------
def gcn_classifier_forward(x, edge_index, batch, params, num_graphs, *,
                           tile_m=None, tile_k=512, mode="auto"):
    assert mode in ("auto", "fused", "tiled")
    n = x.shape[0]
    pp = prepare_params(params)
    cp, hp = pp["cp"], pp["hp"]
    g_pad = _round_up(num_graphs, SUBLANE)
    vmem_limit = _vmem_limit_bytes()
    if tile_m is None:
        tile_m = 512 if vmem_limit > 32 * 1024 * 1024 else 256

    def pad_x(n_pad):
        return (jnp.zeros((n_pad, cp), jnp.float32)
                .at[:n, : x.shape[1]].set(x)
                .astype(jnp.bfloat16))

    # ---------------- fully fused single-call path (small graphs) ------------
    n_pad_f = _round_up(n, SUBLANE)
    fused_bytes = (n_pad_f * n_pad_f * 2 + n_pad_f * (cp * 2 + g_pad * 4)
                   + cp * hp * 2 + 2 * (2 * hp * hp * 2) + 3 * hp * 4
                   + 6 * n_pad_f * hp * 4 + g_pad * hp * 4)
    use_fused = (mode == "fused") or (mode == "auto" and 2 * fused_bytes < vmem_limit)

    if use_fused:
        a_mean, pt_mean = build_graph_operators(edge_index, batch, n, num_graphs,
                                                n_pad_f, g_pad)
        pooled = pl.pallas_call(
            _fused_kernel,
            out_shape=jax.ShapeDtypeStruct((g_pad, hp), jnp.float32),
            compiler_params=pltpu.CompilerParams(vmem_limit_bytes=vmem_limit),
            cost_estimate=pl.CostEstimate(
                flops=(2 * n_pad_f * cp * hp
                       + 2 * (2 * n_pad_f * n_pad_f * hp + 2 * n_pad_f * 2 * hp * hp)
                       + 2 * n_pad_f * g_pad * hp),
                transcendentals=0,
                bytes_accessed=(n_pad_f * n_pad_f * 2 + n_pad_f * cp * 2
                                + n_pad_f * g_pad * 4 + cp * hp * 2
                                + 2 * (2 * hp * hp * 2) + 3 * hp * 4
                                + g_pad * hp * 4)),
        )(pad_x(n_pad_f), a_mean, pt_mean, pp["wlin"], pp["blin"],
          pp["w1f"], pp["b1"], pp["w2f"], pp["b2"])
        return pooled[:num_graphs, : pp["hidden"]]

    # ---------------- tiled path (graphs too large for one VMEM slab) --------
    tm = _round_up(min(tile_m, _round_up(n, SUBLANE)), SUBLANE)
    # keep at least two row tiles so the "parallel" axis can split across
    # v7x's two TensorCores (no-op on single-TC v5e/v6e)
    while tm > SUBLANE and _round_up(n, tm) // tm < 2:
        tm = _round_up(max(tm // 2, SUBLANE), SUBLANE)

    n_pad0 = _round_up(n, tm)
    if n_pad0 <= tile_k:
        tk, n_pad = n_pad0, n_pad0           # single K step; tk == full dim is lane-legal
    else:
        tk = _round_up(tile_k, LANE)
        n_pad = _round_up(n, math.lcm(tm, tk))
    nt, kt = n_pad // tm, n_pad // tk

    # TODO(synk): cache (a_mean, pt_mean) across calls when topology is static; for
    # large sparse graphs replace the dense O(N^2) adjacency + A@H with a
    # scalar-prefetch CSR gather / segment-mean kernel (PrefetchScalarGridSpec).
    a_mean, pt_mean = build_graph_operators(edge_index, batch, n, num_graphs,
                                            n_pad, g_pad)
    x_pad = pad_x(n_pad)

    par = pltpu.CompilerParams(dimension_semantics=("parallel",),
                               vmem_limit_bytes=vmem_limit)
    par_arb = pltpu.CompilerParams(dimension_semantics=("parallel", "arbitrary"),
                                   vmem_limit_bytes=vmem_limit)
    arb = pltpu.CompilerParams(dimension_semantics=("arbitrary",),
                               vmem_limit_bytes=vmem_limit)

    # ---- stage 1: h = x @ Wlin + blin  (dropout1 == identity in eval) ------
    h = pl.pallas_call(
        _lin_kernel,
        grid=(nt,),
        in_specs=[
            pl.BlockSpec((tm, cp), lambda i: (i, 0)),
            pl.BlockSpec((cp, hp), lambda i: (0, 0)),
            pl.BlockSpec((1, hp), lambda i: (0, 0)),
        ],
        out_specs=pl.BlockSpec((tm, hp), lambda i: (i, 0)),
        out_shape=jax.ShapeDtypeStruct((n_pad, hp), jnp.bfloat16),
        compiler_params=par,
        cost_estimate=pl.CostEstimate(
            flops=2 * n_pad * cp * hp, transcendentals=0,
            bytes_accessed=n_pad * cp * 2 + cp * hp * 2 + hp * 4 + n_pad * hp * 2),
    )(x_pad, pp["wlin"], pp["blin"])

    # ---- stages 2/3: SAGEConv layers (+ relu / residual), K-tiled -----------
    def sage(h_in, wf, b, apply_relu):
        flops = 2 * n_pad * n_pad * hp + 2 * n_pad * (2 * hp) * hp
        bytes_acc = (n_pad * n_pad * 2 + nt * n_pad * hp * 2 + n_pad * hp * 2
                     + 2 * hp * hp * 2 + hp * 4 + n_pad * hp * 2)
        return pl.pallas_call(
            functools.partial(_sage_kernel, apply_relu=apply_relu, hp=hp),
            grid=(nt, kt),
            in_specs=[
                pl.BlockSpec((tm, tk), lambda i, k: (i, k)),       # A tile (bf16)
                pl.BlockSpec((tk, hp), lambda i, k: (k, 0)),       # neighbour K-chunk
                pl.BlockSpec((tm, hp), lambda i, k: (i, 0)),       # root / residual tile
                pl.BlockSpec((2 * hp, hp), lambda i, k: (0, 0)),   # fused [W_l ; W_r]
                pl.BlockSpec((1, hp), lambda i, k: (0, 0)),
            ],
            out_specs=pl.BlockSpec((tm, hp), lambda i, k: (i, 0)),
            out_shape=jax.ShapeDtypeStruct((n_pad, hp), jnp.bfloat16),
            scratch_shapes=[pltpu.VMEM((tm, 2 * hp), jnp.float32)],
            compiler_params=par_arb,
            cost_estimate=pl.CostEstimate(flops=flops, transcendentals=0,
                                          bytes_accessed=bytes_acc),
        )(a_mean, h_in, h_in, wf, b)

    out1 = sage(h, pp["w1f"], pp["b1"], True)
    out2 = sage(out1, pp["w2f"], pp["b2"], False)

    # ---- stage 4: global_mean_pool(out2, batch) ----------------------------
    pooled = pl.pallas_call(
        _pool_kernel,
        grid=(nt,),
        in_specs=[
            pl.BlockSpec((tm, g_pad), lambda i: (i, 0)),   # P^T row tile (f32, tiny)
            pl.BlockSpec((tm, hp), lambda i: (i, 0)),      # out2 row tile (bf16)
        ],
        out_specs=pl.BlockSpec((g_pad, hp), lambda i: (0, 0)),
        out_shape=jax.ShapeDtypeStruct((g_pad, hp), jnp.float32),
        compiler_params=arb,
        cost_estimate=pl.CostEstimate(
            flops=2 * n_pad * g_pad * hp, transcendentals=0,
            bytes_accessed=n_pad * g_pad * 4 + n_pad * hp * 2 + g_pad * hp * 4),
    )(pt_mean, out2)

    return pooled[:num_graphs, : pp["hidden"]]


# --------------------------------------------------------------------------
# Pure-JAX reference (f32) for a sanity check
# --------------------------------------------------------------------------
def _reference(x, edge_index, batch, params, num_graphs):
    n = x.shape[0]
    adj = jnp.zeros((n, n), jnp.float32).at[edge_index[1], edge_index[0]].add(1.0)
    a = adj / jnp.maximum(jnp.sum(adj, axis=1, keepdims=True), 1.0)
    h = x @ params["wlin"] + params["blin"]
    out1 = jnp.maximum(a @ h @ params["wl1"] + params["bl1"] + h @ params["wr1"], 0.0) + h
    out2 = (a @ out1 @ params["wl2"] + params["bl2"] + out1 @ params["wr2"]) + out1
    onehot = (batch[None, :] == jnp.arange(num_graphs)[:, None]).astype(jnp.float32)
    p = onehot / jnp.maximum(jnp.sum(onehot, axis=1, keepdims=True), 1.0)
    return p @ out2


if __name__ == "__main__":
    key = jax.random.PRNGKey(0)
    k_x, k_p = jax.random.split(key)

    in_channels = 25        # matches the (unused) Linear(25, 16) hint in the module
    hidden_channels = 32
    num_graphs = 2
    nodes_per_graph = 160   # large enough that the tiled path exercises K-tiling
    n_nodes = num_graphs * nodes_per_graph

    # Deterministic node features.
    x = jax.random.normal(k_x, (n_nodes, in_channels), jnp.float32)

    # Deterministic ring graph inside each component (bidirectional edges).
    srcs, dsts = [], []
    for g in range(num_graphs):
        base = g * nodes_per_graph
        for i in range(nodes_per_graph):
            j = (i + 1) % nodes_per_graph
            srcs += [base + i, base + j]
            dsts += [base + j, base + i]
    edge_index = jnp.array([srcs, dsts], dtype=jnp.int32)
    batch = jnp.repeat(jnp.arange(num_graphs, dtype=jnp.int32), nodes_per_graph)

    params = init_params(k_p, in_channels, hidden_channels)
    ref = _reference(x, edge_index, batch, params, num_graphs)

    # 1) fully fused single-call path (what "auto" selects at connectome scale)
    out_fused = jax.block_until_ready(
        gcn_classifier_forward(x, edge_index, batch, params, num_graphs, mode="fused"))
    # 2) tiled path with small tiles so the row grid, the K-tiled aggregation
    #    accumulator and the pooled accumulator are all exercised.
    out_tiled = jax.block_until_ready(
        gcn_classifier_forward(x, edge_index, batch, params, num_graphs,
                               mode="tiled", tile_m=8, tile_k=128))

    for name, out in (("fused", out_fused), ("tiled", out_tiled)):
        assert out.shape == (num_graphs, hidden_channels)
        err = float(jnp.max(jnp.abs(out - ref)))
        # bf16 MXU operands / bf16 inter-stage activations -> loosened tolerance.
        assert jnp.allclose(out, ref, atol=5e-2, rtol=5e-2), \
            f"{name}: max abs err {err}"

    print("KERNEL_OK")
</pallas_src>

<mosaic_0001>
module attributes {stable_mosaic.version = 11 : i64} {
  func.func @_fused_kernel(%arg0: memref<320x128xbf16, #tpu.memory_space<vmem>>, %arg1: memref<320x320xbf16, #tpu.memory_space<vmem>>, %arg2: memref<320x8xf32, #tpu.memory_space<vmem>>, %arg3: memref<128x128xbf16, #tpu.memory_space<vmem>>, %arg4: memref<1x128xf32, #tpu.memory_space<vmem>>, %arg5: memref<256x128xbf16, #tpu.memory_space<vmem>>, %arg6: memref<1x128xf32, #tpu.memory_space<vmem>>, %arg7: memref<256x128xbf16, #tpu.memory_space<vmem>>, %arg8: memref<1x128xf32, #tpu.memory_space<vmem>>, %arg9: memref<8x128xf32, #tpu.memory_space<vmem>>) attributes {dimension_semantics = [], scalar_prefetch = 0 : i64, scratch_operands = 0 : i64, tpu.core_type = #tpu.core_type<tc>} {
    %c0 = arith.constant 0 : index
    %c0_0 = arith.constant 0 : index
    %0 = vector.load %arg0[%c0, %c0_0] : memref<320x128xbf16, #tpu.memory_space<vmem>>, vector<320x128xbf16>
    %c0_1 = arith.constant 0 : index
    %c0_2 = arith.constant 0 : index
    %1 = vector.load %arg3[%c0_1, %c0_2] : memref<128x128xbf16, #tpu.memory_space<vmem>>, vector<128x128xbf16>
    %cst = arith.constant dense<0.000000e+00> : vector<320x128xf32>
    %2 = tpu.matmul %0, %1, %cst {dimension_numbers = #tpu.dot_dimension_numbers<[1], [0], [0], [1], [0, 0, 1, 1], [], []>} : vector<320x128xbf16>, vector<128x128xbf16>, vector<320x128xf32> -> vector<320x128xf32>
    %c0_3 = arith.constant 0 : index
    %c0_4 = arith.constant 0 : index
    %3 = vector.load %arg4[%c0_3, %c0_4] : memref<1x128xf32, #tpu.memory_space<vmem>>, vector<1x128xf32>
    %4 = vector.broadcast %3 : vector<1x128xf32> to vector<320x128xf32>
    %5 = arith.addf %2, %4 : vector<320x128xf32>
    %c0_5 = arith.constant 0 : index
    %c0_6 = arith.constant 0 : index
    %6 = vector.load %arg1[%c0_5, %c0_6] : memref<320x320xbf16, #tpu.memory_space<vmem>>, vector<320x320xbf16>
    %7 = arith.truncf %5 : vector<320x128xf32> to vector<320x128xbf16>
    %cst_7 = arith.constant dense<0.000000e+00> : vector<320x128xf32>
    %8 = tpu.matmul %6, %7, %cst_7 {dimension_numbers = #tpu.dot_dimension_numbers<[1], [0], [0], [1], [0, 0, 1, 1], [], []>} : vector<320x320xbf16>, vector<320x128xbf16>, vector<320x128xf32> -> vector<320x128xf32>
    %9 = tpu.concatenate %8, %5 in 1 : vector<320x128xf32>, vector<320x128xf32> -> vector<320x256xf32>
    %10 = arith.truncf %9 : vector<320x256xf32> to vector<320x256xbf16>
    %c0_8 = arith.constant 0 : index
    %c0_9 = arith.constant 0 : index
    %11 = vector.load %arg5[%c0_8, %c0_9] : memref<256x128xbf16, #tpu.memory_space<vmem>>, vector<256x128xbf16>
    %cst_10 = arith.constant dense<0.000000e+00> : vector<320x128xf32>
    %12 = tpu.matmul %10, %11, %cst_10 {dimension_numbers = #tpu.dot_dimension_numbers<[1], [0], [0], [1], [0, 0, 1, 1], [], []>} : vector<320x256xbf16>, vector<256x128xbf16>, vector<320x128xf32> -> vector<320x128xf32>
    %c0_11 = arith.constant 0 : index
    %c0_12 = arith.constant 0 : index
    %13 = vector.load %arg6[%c0_11, %c0_12] : memref<1x128xf32, #tpu.memory_space<vmem>>, vector<1x128xf32>
    %14 = vector.broadcast %13 : vector<1x128xf32> to vector<320x128xf32>
    %15 = arith.addf %12, %14 : vector<320x128xf32>
    %cst_13 = arith.constant 0.000000e+00 : f32
    %16 = vector.broadcast %cst_13 : f32 to vector<320x128xf32>
    %17 = arith.maximumf %15, %16 : vector<320x128xf32>
    %18 = arith.addf %17, %5 : vector<320x128xf32>
    %c0_14 = arith.constant 0 : index
    %c0_15 = arith.constant 0 : index
    %19 = vector.load %arg1[%c0_14, %c0_15] : memref<320x320xbf16, #tpu.memory_space<vmem>>, vector<320x320xbf16>
    %20 = arith.truncf %18 : vector<320x128xf32> to vector<320x128xbf16>
    %cst_16 = arith.constant dense<0.000000e+00> : vector<320x128xf32>
    %21 = tpu.matmul %19, %20, %cst_16 {dimension_numbers = #tpu.dot_dimension_numbers<[1], [0], [0], [1], [0, 0, 1, 1], [], []>} : vector<320x320xbf16>, vector<320x128xbf16>, vector<320x128xf32> -> vector<320x128xf32>
    %22 = tpu.concatenate %21, %18 in 1 : vector<320x128xf32>, vector<320x128xf32> -> vector<320x256xf32>
    %23 = arith.truncf %22 : vector<320x256xf32> to vector<320x256xbf16>
    %c0_17 = arith.constant 0 : index
    %c0_18 = arith.constant 0 : index
    %24 = vector.load %arg7[%c0_17, %c0_18] : memref<256x128xbf16, #tpu.memory_space<vmem>>, vector<256x128xbf16>
    %cst_19 = arith.constant dense<0.000000e+00> : vector<320x128xf32>
    %25 = tpu.matmul %23, %24, %cst_19 {dimension_numbers = #tpu.dot_dimension_numbers<[1], [0], [0], [1], [0, 0, 1, 1], [], []>} : vector<320x256xbf16>, vector<256x128xbf16>, vector<320x128xf32> -> vector<320x128xf32>
    %c0_20 = arith.constant 0 : index
    %c0_21 = arith.constant 0 : index
    %26 = vector.load %arg8[%c0_20, %c0_21] : memref<1x128xf32, #tpu.memory_space<vmem>>, vector<1x128xf32>
    %27 = vector.broadcast %26 : vector<1x128xf32> to vector<320x128xf32>
    %28 = arith.addf %25, %27 : vector<320x128xf32>
    %29 = arith.addf %28, %18 : vector<320x128xf32>
    %c0_22 = arith.constant 0 : index
    %c0_23 = arith.constant 0 : index
    %30 = vector.load %arg2[%c0_22, %c0_23] : memref<320x8xf32, #tpu.memory_space<vmem>>, vector<320x8xf32>
    %cst_24 = arith.constant dense<0.000000e+00> : vector<8x128xf32>
    %31 = tpu.matmul %30, %29, %cst_24 {dimension_numbers = #tpu.dot_dimension_numbers<[0], [0], [1], [1], [0, 1, 1, 1], [], []>} : vector<320x8xf32>, vector<320x128xf32>, vector<8x128xf32> -> vector<8x128xf32>
    %c0_25 = arith.constant 0 : index
    %c0_26 = arith.constant 0 : index
    %32 = vector.load %arg9[%c0_25, %c0_26] : memref<8x128xf32, #tpu.memory_space<vmem>>, vector<8x128xf32>
    tpu.vector_store %arg9[%c0_25, %c0_26], %31 {strides = array<i32>} : memref<8x128xf32, #tpu.memory_space<vmem>>, vector<8x128xf32>,
    return
  }
}

</mosaic_0001>

<llo_original>
// kernel: tpu_custom_call.1
$region0: #{tpu_custom_call.1}
  #allocation0 [shape = 'u32[]', space=smem, size = 0x4, offset = 0x4, fixed_abs, tag = 'smem constant byte address 0x4 - core index']
  #allocation1 [shape = 'u32[144,128]{1,0:T(1,128)}', space=vmem, size = 0x12000, scoped, tag = 'internal scratch']
  %s0 = inlined_call_operand.vmem [shape: bf16[320,128], index: 0, kind: input, shape index: {}]
  %s1 = inlined_call_operand.hbm [shape: bf16[320,320], index: 1, kind: input, shape index: {}]
  %s2 = inlined_call_operand.vmem [shape: f32[320,8], index: 2, kind: input, shape index: {}]
  %s3 = inlined_call_operand.hbm [shape: bf16[128,128], index: 3, kind: input, shape index: {}]
  %s4 = inlined_call_operand.vmem [shape: f32[1,128], index: 4, kind: input, shape index: {}]
  %s5 = inlined_call_operand.vmem [shape: bf16[256,128], index: 5, kind: input, shape index: {}]
  %s6 = inlined_call_operand.vmem [shape: f32[1,128], index: 6, kind: input, shape index: {}]
  %s7 = inlined_call_operand.hbm [shape: bf16[256,128], index: 7, kind: input, shape index: {}]
  %s8 = inlined_call_operand.vmem [shape: f32[1,128], index: 8, kind: input, shape index: {}]
  %s9 = inlined_call_operand.hbm [shape: f32[8,128], index: 9, kind: output, shape index: {}]
  %s10 = sld [smem:[#allocation0]]
  $region58: #{tpu_custom_call.1} parent=0
    _
  %s12 = ssub.s32 1, %s10
  %s13 = scalar_select 0, %s12, %s10
  $region1: #{tpu_custom_call.1} parent=0
    #allocation2 [shape = 'u8[245760]{0}', space=vmem, size = 0x3c000, scoped, tag = 'input window, operand 1, single buffered']
    #allocation3 [shape = 's32[1]{0}', space=sflag, size = 0x4, scoped, tag = 'scoped memory for tpu_custom_call.1']
    #allocation4 [shape = 's32[1]{0}', space=sflag, size = 0x4, scoped, tag = 'scoped memory for tpu_custom_call.1']
    #allocation5 [shape = 'u8[32768]{0}', space=vmem, size = 0x8000, scoped, tag = 'input window, operand 3, single buffered']
    #allocation6 [shape = 's32[1]{0}', space=sflag, size = 0x4, scoped, tag = 'scoped memory for tpu_custom_call.1']
    #allocation7 [shape = 'u8[65536]{0}', space=vmem, size = 0x10000, scoped, tag = 'input window, operand 7, single buffered']
    #allocation8 [shape = 'u8[4096]{0}', space=vmem, size = 0x1000, scoped, tag = 'output window, operand 0, single buffered']
    %14 = vsyncpa [#allocation3], 0
    %15 = vsyncpa [#allocation6], 0
    %16 = vsyncpa [#allocation4], 0
    // Predicated region
    $region2: #{tpu_custom_call.1} parent=1 // pred_check
      _
    $region3: #{tpu_custom_call.1} parent=1 // pred_check_branch
      %18 = sbr.rel (0) target = $region5
    $region4: #{tpu_custom_call.1} parent=1 // pred_region
      _
    $region5: #{tpu_custom_call.1} parent=1 // pred_fallthru
      _
    // Predicated region
    $region6: #{tpu_custom_call.1} parent=1 // pred_check
      _
    $region7: #{tpu_custom_call.1} parent=1 // pred_check_branch
      %20 = sbr.rel (0) target = $region9
    $region8: #{tpu_custom_call.1} parent=1 // pred_region
      %s22 = ssub.s32 7680, 7680
      %23 = vsyncadd [#allocation3], %s22
      %s24 = sshll.u32 [#allocation2], 4
      %s25 = int_to_ptr.vmem [resolvable:$true] %s24
      %30 = dma.hbm_to_vmem [thread:$0]  %s1, 7680, %s25, [#allocation3], 192, 192, 12
    $region9: #{tpu_custom_call.1} parent=1 // pred_fallthru
      _
    // Predicated region
    $region10: #{tpu_custom_call.1} parent=1 // pred_check
      _
    $region11: #{tpu_custom_call.1} parent=1 // pred_check_branch
      %32 = sbr.rel (0) target = $region13
    $region12: #{tpu_custom_call.1} parent=1 // pred_region
      _
    $region13: #{tpu_custom_call.1} parent=1 // pred_fallthru
      _
    // Predicated region
    $region14: #{tpu_custom_call.1} parent=1 // pred_check
      _
    $region15: #{tpu_custom_call.1} parent=1 // pred_check_branch
      %34 = sbr.rel (0) target = $region17
    $region16: #{tpu_custom_call.1} parent=1 // pred_region
      %s36 = ssub.s32 1024, 1024
      %37 = vsyncadd [#allocation6], %s36
      %s38 = sshll.u32 [#allocation5], 4
      %s39 = int_to_ptr.vmem [resolvable:$true] %s38
      %44 = dma.hbm_to_vmem [thread:$0]  %s3, 1024, %s39, [#allocation6], 64, 64, 4
    $region17: #{tpu_custom_call.1} parent=1 // pred_fallthru
      _
    // Predicated region
    $region18: #{tpu_custom_call.1} parent=1 // pred_check
      _
    $region19: #{tpu_custom_call.1} parent=1 // pred_check_branch
      %46 = sbr.rel (0) target = $region21
    $region20: #{tpu_custom_call.1} parent=1 // pred_region
      _
    $region21: #{tpu_custom_call.1} parent=1 // pred_fallthru
      _
    // Predicated region
    $region22: #{tpu_custom_call.1} parent=1 // pred_check
      _
    $region23: #{tpu_custom_call.1} parent=1 // pred_check_branch
      %48 = sbr.rel (0) target = $region25
    $region24: #{tpu_custom_call.1} parent=1 // pred_region
      _
    $region25: #{tpu_custom_call.1} parent=1 // pred_fallthru
      _
    // Predicated region
    $region26: #{tpu_custom_call.1} parent=1 // pred_check
      _
    $region27: #{tpu_custom_call.1} parent=1 // pred_check_branch
      %50 = sbr.rel (0) target = $region29
    $region28: #{tpu_custom_call.1} parent=1 // pred_region
      _
    $region29: #{tpu_custom_call.1} parent=1 // pred_fallthru
      _
    // Predicated region
    $region30: #{tpu_custom_call.1} parent=1 // pred_check
      _
    $region31: #{tpu_custom_call.1} parent=1 // pred_check_branch
      %52 = sbr.rel (0) target = $region33
    $region32: #{tpu_custom_call.1} parent=1 // pred_region
      %s54 = ssub.s32 2048, 2048
      %55 = vsyncadd [#allocation6], %s54
      %s56 = sshll.u32 [#allocation7], 4
      %s57 = int_to_ptr.vmem [resolvable:$true] %s56
      %62 = dma.hbm_to_vmem [thread:$0]  %s7, 2048, %s57, [#allocation6], 64, 64, 4
    $region33: #{tpu_custom_call.1} parent=1 // pred_fallthru
      _
    // Predicated region
    $region34: #{tpu_custom_call.1} parent=1 // pred_check
      _
    $region35: #{tpu_custom_call.1} parent=1 // pred_check_branch
      %64 = sbr.rel (0) target = $region37
    $region36: #{tpu_custom_call.1} parent=1 // pred_region
      _
    $region37: #{tpu_custom_call.1} parent=1 // pred_fallthru
      _
    // Predicated region
    $region38: #{tpu_custom_call.1} parent=1 // pred_check
      _
    $region39: #{tpu_custom_call.1} parent=1 // pred_check_branch
      %66 = sbr.rel (0) target = $region41
    $region40: #{tpu_custom_call.1} parent=1 // pred_region
      %67 = dma.done [#allocation3], 7680
    $region41: #{tpu_custom_call.1} parent=1 // pred_fallthru
      _
    // Predicated region
    $region42: #{tpu_custom_call.1} parent=1 // pred_check
      _
    $region43: #{tpu_custom_call.1} parent=1 // pred_check_branch
      %69 = sbr.rel (0) target = $region45
    $region44: #{tpu_custom_call.1} parent=1 // pred_region
      %70 = dma.done [#allocation6], 1024
    $region45: #{tpu_custom_call.1} parent=1 // pred_fallthru
      _
    // Predicated region
    $region46: #{tpu_custom_call.1} parent=1 // pred_check
      _
    $region47: #{tpu_custom_call.1} parent=1 // pred_check_branch
      %72 = sbr.rel (0) target = $region49
    $region48: #{tpu_custom_call.1} parent=1 // pred_region
      %73 = dma.done [#allocation6], 2048
    $region49: #{tpu_custom_call.1} parent=1 // pred_fallthru
      _
    %v75 = vld [vmem:[%s0] sm:$0xf]
    %v76 = vld [vmem:[%s0 + $0x4] sm:$0xf]
    %v77 = vld [vmem:[%s0 + $0x8] sm:$0xf]
    %v78 = vld [vmem:[%s0 + $0xc] sm:$0xf]
    %v79 = vld [vmem:[%s0 + $0x10] sm:$0xf]
    %v80 = vld [vmem:[%s0 + $0x14] sm:$0xf]
    %v81 = vld [vmem:[%s0 + $0x18] sm:$0xf]
    %v82 = vld [vmem:[%s0 + $0x1c] sm:$0xf]
    %v83 = vld [vmem:[%s0 + $0x20] sm:$0xf]
    %v84 = vld [vmem:[%s0 + $0x24] sm:$0xf]
    %v85 = vld [vmem:[%s0 + $0x28] sm:$0xf]
    %v86 = vld [vmem:[%s0 + $0x2c] sm:$0xf]
    %v87 = vld [vmem:[%s0 + $0x30] sm:$0xf]
    %v88 = vld [vmem:[%s0 + $0x34] sm:$0xf]
    %v89 = vld [vmem:[%s0 + $0x38] sm:$0xf]
    %v90 = vld [vmem:[%s0 + $0x3c] sm:$0xf]
    %v91 = vld [vmem:[%s0 + $0x40] sm:$0xf]
    %v92 = vld [vmem:[%s0 + $0x44] sm:$0xf]
    %v93 = vld [vmem:[%s0 + $0x48] sm:$0xf]
    %v94 = vld [vmem:[%s0 + $0x4c] sm:$0xf]
    %v95 = vld [vmem:[%s0 + $0x50] sm:$0xf]
    %v96 = vld [vmem:[%s0 + $0x54] sm:$0xf]
    %v97 = vld [vmem:[%s0 + $0x58] sm:$0xf]
    %v98 = vld [vmem:[%s0 + $0x5c] sm:$0xf]
    %v99 = vld [vmem:[%s0 + $0x60] sm:$0xf]
    %v100 = vld [vmem:[%s0 + $0x64] sm:$0xf]
    %v101 = vld [vmem:[%s0 + $0x68] sm:$0xf]
    %v102 = vld [vmem:[%s0 + $0x6c] sm:$0xf]
    %v103 = vld [vmem:[%s0 + $0x70] sm:$0xf]
    %v104 = vld [vmem:[%s0 + $0x74] sm:$0xf]
    %v105 = vld [vmem:[%s0 + $0x78] sm:$0xf]
    %v106 = vld [vmem:[%s0 + $0x7c] sm:$0xf]
    %v107 = vld [vmem:[%s0 + $0x80] sm:$0xf]
    %v108 = vld [vmem:[%s0 + $0x84] sm:$0xf]
    %v109 = vld [vmem:[%s0 + $0x88] sm:$0xf]
    %v110 = vld [vmem:[%s0 + $0x8c] sm:$0xf]
    %v111 = vld [vmem:[%s0 + $0x90] sm:$0xf]
    %v112 = vld [vmem:[%s0 + $0x94] sm:$0xf]
    %v113 = vld [vmem:[%s0 + $0x98] sm:$0xf]
    %v114 = vld [vmem:[%s0 + $0x9c] sm:$0xf]
    %v115 = vld [vmem:[#allocation5] sm:$0xf]
    %v116 = vld [vmem:[#allocation5 + $0x4] sm:$0xf]
    %v117 = vld [vmem:[#allocation5 + $0x8] sm:$0xf]
    %v118 = vld [vmem:[#allocation5 + $0xc] sm:$0xf]
    %v119 = vld [vmem:[#allocation5 + $0x10] sm:$0xf]
    %v120 = vld [vmem:[#allocation5 + $0x14] sm:$0xf]
    %v121 = vld [vmem:[#allocation5 + $0x18] sm:$0xf]
    %v122 = vld [vmem:[#allocation5 + $0x1c] sm:$0xf]
    %v123 = vld [vmem:[#allocation5 + $0x20] sm:$0xf]
    %v124 = vld [vmem:[#allocation5 + $0x24] sm:$0xf]
    %v125 = vld [vmem:[#allocation5 + $0x28] sm:$0xf]
    %v126 = vld [vmem:[#allocation5 + $0x2c] sm:$0xf]
    %v127 = vld [vmem:[#allocation5 + $0x30] sm:$0xf]
    %v128 = vld [vmem:[#allocation5 + $0x34] sm:$0xf]
    %v129 = vld [vmem:[#allocation5 + $0x38] sm:$0xf]
    %v130 = vld [vmem:[#allocation5 + $0x3c] sm:$0xf]
    %v131 = vld [vmem:[%s4] sm:$0x1]
    %v133 = vlaneseq
    %v134 = vshrl.u32 %v133, 7
    %v135 = vsub.s32 0, %v134
    %v136 = vrot.slane %v131, %v135
    %v178 = vunpack.c.l.b16 %v75
    %v179 = vunpack.c.l.b16 %v76
    %v180 = vunpack.c.l.b16 %v77
    %v181 = vunpack.c.l.b16 %v78
    %v182 = vunpack.c.l.b16 %v79
    %v183 = vunpack.c.l.b16 %v80
    %v184 = vunpack.c.l.b16 %v81
    %v185 = vunpack.c.l.b16 %v82
    %v186 = vunpack.c.l.b16 %v83
    %v187 = vunpack.c.l.b16 %v84
    %v188 = vunpack.c.l.b16 %v85
    %v189 = vunpack.c.l.b16 %v86
    %v190 = vunpack.c.l.b16 %v87
    %v191 = vunpack.c.l.b16 %v88
    %v192 = vunpack.c.l.b16 %v89
    %v193 = vunpack.c.l.b16 %v90
    %v194 = vunpack.c.l.b16 %v91
    %v195 = vunpack.c.l.b16 %v92
    %v196 = vunpack.c.l.b16 %v93
    %v197 = vunpack.c.l.b16 %v94
    %v198 = vunpack.c.l.b16 %v95
    %v199 = vunpack.c.l.b16 %v96
    %v200 = vunpack.c.l.b16 %v97
    %v201 = vunpack.c.l.b16 %v98
    %v202 = vunpack.c.l.b16 %v99
    %v203 = vunpack.c.l.b16 %v100
    %v204 = vunpack.c.l.b16 %v101
    %v205 = vunpack.c.l.b16 %v102
    %v206 = vunpack.c.l.b16 %v103
    %v207 = vunpack.c.l.b16 %v104
    %v208 = vunpack.c.l.b16 %v105
    %v209 = vunpack.c.l.b16 %v106
    %v210 = vunpack.c.l.b16 %v107
    %v211 = vunpack.c.l.b16 %v108
    %v212 = vunpack.c.l.b16 %v109
    %v213 = vunpack.c.l.b16 %v110
    %v214 = vunpack.c.l.b16 %v111
    %v215 = vunpack.c.l.b16 %v112
    %v216 = vunpack.c.l.b16 %v113
    %v217 = vunpack.c.l.b16 %v114
    %v218 = vpack.c.b16 %v179, %v178
    %v219 = vpack.c.b16 %v181, %v180
    %v220 = vpack.c.b16 %v183, %v182
    %v221 = vpack.c.b16 %v185, %v184
    %v222 = vpack.c.b16 %v187, %v186
    %v223 = vpack.c.b16 %v189, %v188
    %v224 = vpack.c.b16 %v191, %v190
    %v225 = vpack.c.b16 %v193, %v192
    %v226 = vpack.c.b16 %v195, %v194
    %v227 = vpack.c.b16 %v197, %v196
    %v228 = vpack.c.b16 %v199, %v198
    %v229 = vpack.c.b16 %v201, %v200
    %v230 = vpack.c.b16 %v203, %v202
    %v231 = vpack.c.b16 %v205, %v204
    %v232 = vpack.c.b16 %v207, %v206
    %v233 = vpack.c.b16 %v209, %v208
    %v234 = vpack.c.b16 %v211, %v210
    %v235 = vpack.c.b16 %v213, %v212
    %v236 = vpack.c.b16 %v215, %v214
    %v237 = vpack.c.b16 %v217, %v216
    %v274 = vunpack.c.l.b16 %v115
    %v275 = vunpack.c.l.b16 %v116
    %v276 = vunpack.c.l.b16 %v117
    %v277 = vunpack.c.l.b16 %v118
    %v278 = vunpack.c.l.b16 %v119
    %v279 = vunpack.c.l.b16 %v120
    %v280 = vunpack.c.l.b16 %v121
    %v281 = vunpack.c.l.b16 %v122
    %v282 = vunpack.c.l.b16 %v123
    %v283 = vunpack.c.l.b16 %v124
    %v284 = vunpack.c.l.b16 %v125
    %v285 = vunpack.c.l.b16 %v126
    %v286 = vunpack.c.l.b16 %v127
    %v287 = vunpack.c.l.b16 %v128
    %v288 = vunpack.c.l.b16 %v129
    %v289 = vunpack.c.l.b16 %v130
    %v290 = vpack.c.b16 %v275, %v274
    %v291 = vpack.c.b16 %v277, %v276
    %v292 = vpack.c.b16 %v279, %v278
    %v293 = vpack.c.b16 %v281, %v280
    %v294 = vpack.c.b16 %v283, %v282
    %v295 = vpack.c.b16 %v285, %v284
    %v296 = vpack.c.b16 %v287, %v286
    %v297 = vpack.c.b16 %v289, %v288
    %306 = vmatprep.subr.bf16.mxu0 0
    %307 = vmatpush1.bf16.msra.mxu0 %v297
    %308 = vmatprep.subr.bf16.mxu0 0
    %309 = vmatpush1.bf16.msra.mxu0 %v296
    %310 = vmatprep.subr.bf16.mxu0 0
    %311 = vmatpush1.bf16.msra.mxu0 %v295
    %312 = vmatprep.subr.bf16.mxu0 0
    %313 = vmatpush1.bf16.msra.mxu0 %v294
    %314 = vmatprep.subr.bf16.mxu0 0
    %315 = vmatpush1.bf16.msra.mxu0 %v293
    %316 = vmatprep.subr.bf16.mxu0 0
    %317 = vmatpush1.bf16.msra.mxu0 %v292
    %318 = vmatprep.subr.bf16.mxu0 0
    %319 = vmatpush1.bf16.msra.mxu0 %v291
    %320 = vmatprep.subr.bf16.mxu0 0
    %321 = vmatpush1.bf16.msra.mxu0 %v290
    %322 = vmatprep.subr.bf16.mxu0 0
    %323 = vmatpush2.bf16.msra.mxu0 0
    %324 = vmatprep.subr.bf16.mxu0 0
    %325 = vmatpush2.bf16.msra.mxu0 0
    %326 = vmatprep.subr.bf16.mxu0 0
    %327 = vmatpush2.bf16.msra.mxu0 0
    %328 = vmatprep.subr.bf16.mxu0 0
    %329 = vmatpush2.bf16.msra.mxu0 0
    %330 = vmatprep.subr.bf16.mxu0 0
    %331 = vmatpush2.bf16.msra.mxu0 0
    %332 = vmatprep.subr.bf16.mxu0 0
    %333 = vmatpush2.bf16.msra.mxu0 0
    %334 = vmatprep.subr.bf16.mxu0 0
    %335 = vmatpush2.bf16.msra.mxu0 0
    %336 = vmatprep.subr.bf16.mxu0 0
    %337 = vmatpush2.bf16.msra.mxu0 0
    %338 = vmatprep.mubr.bf16.mxu0 0
    %339 = vmatmul.mubr.bf16.gmra.mxu0 %v218
    %v340 = vpop.f32.mrf.mxu0
    %v341 = vadd.f32 %v136, %v340
    %v342 = vpop.f32.mrf.mxu0
    %v343 = vpop.f32.mrf.mxu0
    %v344 = vadd.f32 %v136, %v343
    %v345 = vpop.f32.mrf.mxu0
    %346 = vmatprep.mubr.bf16.mxu0 0
    %347 = vmatmul.mubr.bf16.gmra.mxu0 %v219
    %v348 = vpop.f32.mrf.mxu0
    %v349 = vadd.f32 %v136, %v348
    %v350 = vpop.f32.mrf.mxu0
    %v351 = vpop.f32.mrf.mxu0
    %v352 = vadd.f32 %v136, %v351
    %v353 = vpop.f32.mrf.mxu0
    %354 = vmatprep.mubr.bf16.mxu0 0
    %355 = vmatmul.mubr.bf16.gmra.mxu0 %v220
    %v356 = vpop.f32.mrf.mxu0
    %v357 = vadd.f32 %v136, %v356
    %v358 = vpop.f32.mrf.mxu0
    %v359 = vpop.f32.mrf.mxu0
    %v360 = vadd.f32 %v136, %v359
    %v361 = vpop.f32.mrf.mxu0
    %362 = vmatprep.mubr.bf16.mxu0 0
    %363 = vmatmul.mubr.bf16.gmra.mxu0 %v221
    %v364 = vpop.f32.mrf.mxu0
    %v365 = vadd.f32 %v136, %v364
    %v366 = vpop.f32.mrf.mxu0
    %v367 = vpop.f32.mrf.mxu0
    %v368 = vadd.f32 %v136, %v367
    %v369 = vpop.f32.mrf.mxu0
    %370 = vmatprep.mubr.bf16.mxu0 0
    %371 = vmatmul.mubr.bf16.gmra.mxu0 %v222
    %v372 = vpop.f32.mrf.mxu0
    %v373 = vadd.f32 %v136, %v372
    %v374 = vpop.f32.mrf.mxu0
    %v375 = vpop.f32.mrf.mxu0
    %v376 = vadd.f32 %v136, %v375
    %v377 = vpop.f32.mrf.mxu0
    %378 = vmatprep.mubr.bf16.mxu0 0
    %379 = vmatmul.mubr.bf16.gmra.mxu0 %v223
    %v380 = vpop.f32.mrf.mxu0
    %v381 = vadd.f32 %v136, %v380
    %v382 = vpop.f32.mrf.mxu0
    %v383 = vpop.f32.mrf.mxu0
    %v384 = vadd.f32 %v136, %v383
    %v385 = vpop.f32.mrf.mxu0
    %386 = vmatprep.mubr.bf16.mxu0 0
    %387 = vmatmul.mubr.bf16.gmra.mxu0 %v224
    %v388 = vpop.f32.mrf.mxu0
    %v389 = vadd.f32 %v136, %v388
    %v390 = vpop.f32.mrf.mxu0
    %v391 = vpop.f32.mrf.mxu0
    %v392 = vadd.f32 %v136, %v391
    %v393 = vpop.f32.mrf.mxu0
    %394 = vmatprep.mubr.bf16.mxu0 0
    %395 = vmatmul.mubr.bf16.gmra.mxu0 %v225
    %v396 = vpop.f32.mrf.mxu0
    %v397 = vadd.f32 %v136, %v396
    %v398 = vpop.f32.mrf.mxu0
    %v399 = vpop.f32.mrf.mxu0
    %v400 = vadd.f32 %v136, %v399
    %v401 = vpop.f32.mrf.mxu0
    %402 = vmatprep.mubr.bf16.mxu0 0
    %403 = vmatmul.mubr.bf16.gmra.mxu0 %v226
    %v404 = vpop.f32.mrf.mxu0
    %v405 = vadd.f32 %v136, %v404
    %v406 = vpop.f32.mrf.mxu0
    %v407 = vpop.f32.mrf.mxu0
    %v408 = vadd.f32 %v136, %v407
    %v409 = vpop.f32.mrf.mxu0
    %410 = vmatprep.mubr.bf16.mxu0 0
    %411 = vmatmul.mubr.bf16.gmra.mxu0 %v227
    %v412 = vpop.f32.mrf.mxu0
    %v413 = vadd.f32 %v136, %v412
    %v414 = vpop.f32.mrf.mxu0
    %v415 = vpop.f32.mrf.mxu0
    %v416 = vadd.f32 %v136, %v415
    %v417 = vpop.f32.mrf.mxu0
    %418 = vmatprep.mubr.bf16.mxu0 0
    %419 = vmatmul.mubr.bf16.gmra.mxu0 %v228
    %v420 = vpop.f32.mrf.mxu0
    %v421 = vadd.f32 %v136, %v420
    %v422 = vpop.f32.mrf.mxu0
    %v423 = vpop.f32.mrf.mxu0
    %v424 = vadd.f32 %v136, %v423
    %v425 = vpop.f32.mrf.mxu0
    %426 = vmatprep.mubr.bf16.mxu0 0
    %427 = vmatmul.mubr.bf16.gmra.mxu0 %v229
    %v428 = vpop.f32.mrf.mxu0
    %v429 = vadd.f32 %v136, %v428
    %v430 = vpop.f32.mrf.mxu0
    %v431 = vpop.f32.mrf.mxu0
    %v432 = vadd.f32 %v136, %v431
    %v433 = vpop.f32.mrf.mxu0
    %434 = vmatprep.mubr.bf16.mxu0 0
    %435 = vmatmul.mubr.bf16.gmra.mxu0 %v230
    %v436 = vpop.f32.mrf.mxu0
    %v437 = vadd.f32 %v136, %v436
    %v438 = vpop.f32.mrf.mxu0
    %v439 = vpop.f32.mrf.mxu0
    %v440 = vadd.f32 %v136, %v439
    %v441 = vpop.f32.mrf.mxu0
    %442 = vmatprep.mubr.bf16.mxu0 0
    %443 = vmatmul.mubr.bf16.gmra.mxu0 %v231
    %v444 = vpop.f32.mrf.mxu0
    %v445 = vadd.f32 %v136, %v444
    %v446 = vpop.f32.mrf.mxu0
    %v447 = vpop.f32.mrf.mxu0
    %v448 = vadd.f32 %v136, %v447
    %v449 = vpop.f32.mrf.mxu0
    %450 = vmatprep.mubr.bf16.mxu0 0
    %451 = vmatmul.mubr.bf16.gmra.mxu0 %v232
    %v452 = vpop.f32.mrf.mxu0
    %v453 = vadd.f32 %v136, %v452
    %v454 = vpop.f32.mrf.mxu0
    %v455 = vpop.f32.mrf.mxu0
    %v456 = vadd.f32 %v136, %v455
    %v457 = vpop.f32.mrf.mxu0
    %458 = vmatprep.mubr.bf16.mxu0 0
    %459 = vmatmul.mubr.bf16.gmra.mxu0 %v233
    %v460 = vpop.f32.mrf.mxu0
    %v461 = vadd.f32 %v136, %v460
    %v462 = vpop.f32.mrf.mxu0
    %v463 = vpop.f32.mrf.mxu0
    %v464 = vadd.f32 %v136, %v463
    %v465 = vpop.f32.mrf.mxu0
    %466 = vmatprep.mubr.bf16.mxu0 0
    %467 = vmatmul.mubr.bf16.gmra.mxu0 %v234
    %v468 = vpop.f32.mrf.mxu0
    %v469 = vadd.f32 %v136, %v468
    %v470 = vpop.f32.mrf.mxu0
    %v471 = vpop.f32.mrf.mxu0
    %v472 = vadd.f32 %v136, %v471
    %v473 = vpop.f32.mrf.mxu0
    %474 = vmatprep.mubr.bf16.mxu0 0
    %475 = vmatmul.mubr.bf16.gmra.mxu0 %v235
    %v476 = vpop.f32.mrf.mxu0
    %v477 = vadd.f32 %v136, %v476
    %v478 = vpop.f32.mrf.mxu0
    %v479 = vpop.f32.mrf.mxu0
    %v480 = vadd.f32 %v136, %v479
    %v481 = vpop.f32.mrf.mxu0
    %482 = vmatprep.mubr.bf16.mxu0 0
    %483 = vmatmul.mubr.bf16.gmra.mxu0 %v236
    %v484 = vpop.f32.mrf.mxu0
    %v485 = vadd.f32 %v136, %v484
    %v486 = vpop.f32.mrf.mxu0
    %v487 = vpop.f32.mrf.mxu0
    %v488 = vadd.f32 %v136, %v487
    %v489 = vpop.f32.mrf.mxu0
    %490 = vmatprep.mubr.bf16.mxu0 0
    %491 = vmatmul.mubr.bf16.gmra.mxu0 %v237
    %v492 = vpop.f32.mrf.mxu0
    %v493 = vadd.f32 %v136, %v492
    %v494 = vpop.f32.mrf.mxu0
    %v495 = vpop.f32.mrf.mxu0
    %v496 = vadd.f32 %v136, %v495
    %v497 = vpop.f32.mrf.mxu0
    %498 = vdwg.mxu0
    %v499 = vld [vmem:[#allocation2] sm:$0xff]
    %v500 = vld [vmem:[#allocation2 + $0x8] sm:$0xf]
    %v501 = vld [vmem:[#allocation2 + $0xc] sm:$0xff]
    %v502 = vld [vmem:[#allocation2 + $0x14] sm:$0xf]
    %v503 = vld [vmem:[#allocation2 + $0x18] sm:$0xff]
    %v504 = vld [vmem:[#allocation2 + $0x20] sm:$0xf]
    %v505 = vld [vmem:[#allocation2 + $0x24] sm:$0xff]
    %v506 = vld [vmem:[#allocation2 + $0x2c] sm:$0xf]
    %v507 = vld [vmem:[#allocation2 + $0x30] sm:$0xff]
    %v508 = vld [vmem:[#allocation2 + $0x38] sm:$0xf]
    %v509 = vld [vmem:[#allocation2 + $0x3c] sm:$0xff]
    %v510 = vld [vmem:[#allocation2 + $0x44] sm:$0xf]
    %v511 = vld [vmem:[#allocation2 + $0x48] sm:$0xff]
    %v512 = vld [vmem:[#allocation2 + $0x50] sm:$0xf]
    %v513 = vld [vmem:[#allocation2 + $0x54] sm:$0xff]
    %v514 = vld [vmem:[#allocation2 + $0x5c] sm:$0xf]
    %v515 = vld [vmem:[#allocation2 + $0x60] sm:$0xff]
    %v516 = vld [vmem:[#allocation2 + $0x68] sm:$0xf]
    %v517 = vld [vmem:[#allocation2 + $0x6c] sm:$0xff]
    %v518 = vld [vmem:[#allocation2 + $0x74] sm:$0xf]
    %v519 = vld [vmem:[#allocation2 + $0x78] sm:$0xff]
    %v520 = vld [vmem:[#allocation2 + $0x80] sm:$0xf]
    %v521 = vld [vmem:[#allocation2 + $0x84] sm:$0xff]
    %v522 = vld [vmem:[#allocation2 + $0x8c] sm:$0xf]
    %v523 = vld [vmem:[#allocation2 + $0x90] sm:$0xff]
    %v524 = vld [vmem:[#allocation2 + $0x98] sm:$0xf]
    %v525 = vld [vmem:[#allocation2 + $0x9c] sm:$0xff]
    %v526 = vld [vmem:[#allocation2 + $0xa4] sm:$0xf]
    %v527 = vld [vmem:[#allocation2 + $0xa8] sm:$0xff]
    %v528 = vld [vmem:[#allocation2 + $0xb0] sm:$0xf]
    %v529 = vld [vmem:[#allocation2 + $0xb4] sm:$0xff]
    %v530 = vld [vmem:[#allocation2 + $0xbc] sm:$0xf]
    %v531 = vld [vmem:[#allocation2 + $0xc0] sm:$0xff]
    %v532 = vld [vmem:[#allocation2 + $0xc8] sm:$0xf]
    %v533 = vld [vmem:[#allocation2 + $0xcc] sm:$0xff]
    %v534 = vld [vmem:[#allocation2 + $0xd4] sm:$0xf]
    %v535 = vld [vmem:[#allocation2 + $0xd8] sm:$0xff]
    %v536 = vld [vmem:[#allocation2 + $0xe0] sm:$0xf]
    %v537 = vld [vmem:[#allocation2 + $0xe4] sm:$0xff]
    %v538 = vld [vmem:[#allocation2 + $0xec] sm:$0xf]
    %v539 = vld [vmem:[#allocation2 + $0xf0] sm:$0xff]
    %v540 = vld [vmem:[#allocation2 + $0xf8] sm:$0xf]
    %v541 = vld [vmem:[#allocation2 + $0xfc] sm:$0xff]
    %v542 = vld [vmem:[#allocation2 + $0x104] sm:$0xf]
    %v543 = vld [vmem:[#allocation2 + $0x108] sm:$0xff]
    %v544 = vld [vmem:[#allocation2 + $0x110] sm:$0xf]
    %v545 = vld [vmem:[#allocation2 + $0x114] sm:$0xff]
    %v546 = vld [vmem:[#allocation2 + $0x11c] sm:$0xf]
    %v547 = vld [vmem:[#allocation2 + $0x120] sm:$0xff]
    %v548 = vld [vmem:[#allocation2 + $0x128] sm:$0xf]
    %v549 = vld [vmem:[#allocation2 + $0x12c] sm:$0xff]
    %v550 = vld [vmem:[#allocation2 + $0x134] sm:$0xf]
    %v551 = vld [vmem:[#allocation2 + $0x138] sm:$0xff]
    %v552 = vld [vmem:[#allocation2 + $0x140] sm:$0xf]
    %v553 = vld [vmem:[#allocation2 + $0x144] sm:$0xff]
    %v554 = vld [vmem:[#allocation2 + $0x14c] sm:$0xf]
    %v555 = vld [vmem:[#allocation2 + $0x150] sm:$0xff]
    %v556 = vld [vmem:[#allocation2 + $0x158] sm:$0xf]
    %v557 = vld [vmem:[#allocation2 + $0x15c] sm:$0xff]
    %v558 = vld [vmem:[#allocation2 + $0x164] sm:$0xf]
    %v559 = vld [vmem:[#allocation2 + $0x168] sm:$0xff]
    %v560 = vld [vmem:[#allocation2 + $0x170] sm:$0xf]
    %v561 = vld [vmem:[#allocation2 + $0x174] sm:$0xff]
    %v562 = vld [vmem:[#allocation2 + $0x17c] sm:$0xf]
    %v563 = vld [vmem:[#allocation2 + $0x180] sm:$0xff]
    %v564 = vld [vmem:[#allocation2 + $0x188] sm:$0xf]
    %v565 = vld [vmem:[#allocation2 + $0x18c] sm:$0xff]
    %v566 = vld [vmem:[#allocation2 + $0x194] sm:$0xf]
    %v567 = vld [vmem:[#allocation2 + $0x198] sm:$0xff]
    %v568 = vld [vmem:[#allocation2 + $0x1a0] sm:$0xf]
    %v569 = vld [vmem:[#allocation2 + $0x1a4] sm:$0xff]
    %v570 = vld [vmem:[#allocation2 + $0x1ac] sm:$0xf]
    %v571 = vld [vmem:[#allocation2 + $0x1b0] sm:$0xff]
    %v572 = vld [vmem:[#allocation2 + $0x1b8] sm:$0xf]
    %v573 = vld [vmem:[#allocation2 + $0x1bc] sm:$0xff]
    %v574 = vld [vmem:[#allocation2 + $0x1c4] sm:$0xf]
    %v575 = vld [vmem:[#allocation2 + $0x1c8] sm:$0xff]
    %v576 = vld [vmem:[#allocation2 + $0x1d0] sm:$0xf]
    %v577 = vld [vmem:[#allocation2 + $0x1d4] sm:$0xff]
    %v578 = vld [vmem:[#allocation2 + $0x1dc] sm:$0xf]
    %v579 = vpack.c.bf16 %v344, %v341
    %v580 = vpack.c.bf16 %v352, %v349
    %v581 = vpack.c.bf16 %v360, %v357
    %v582 = vpack.c.bf16 %v368, %v365
    %v583 = vpack.c.bf16 %v376, %v373
    %v584 = vpack.c.bf16 %v384, %v381
    %v585 = vpack.c.bf16 %v392, %v389
    %v586 = vpack.c.bf16 %v400, %v397
    %v587 = vpack.c.bf16 %v408, %v405
    %v588 = vpack.c.bf16 %v416, %v413
    %v589 = vpack.c.bf16 %v424, %v421
    %v590 = vpack.c.bf16 %v432, %v429
    %v591 = vpack.c.bf16 %v440, %v437
    %v592 = vpack.c.bf16 %v448, %v445
    %v593 = vpack.c.bf16 %v456, %v453
    %v594 = vpack.c.bf16 %v464, %v461
    %v595 = vpack.c.bf16 %v472, %v469
    %v596 = vpack.c.bf16 %v480, %v477
    %v597 = vpack.c.bf16 %v488, %v485
    %v598 = vpack.c.bf16 %v496, %v493
    %v679 = vunpack.c.l.b16 %v499
    %v680 = vunpack.c.h.b16 %v499
    %v681 = vunpack.c.l.b16 %v500
    %v682 = vunpack.c.l.b16 %v501
    %v683 = vunpack.c.h.b16 %v501
    %v684 = vunpack.c.l.b16 %v502
    %v685 = vunpack.c.l.b16 %v503
    %v686 = vunpack.c.h.b16 %v503
    %v687 = vunpack.c.l.b16 %v504
    %v688 = vunpack.c.l.b16 %v505
    %v689 = vunpack.c.h.b16 %v505
    %v690 = vunpack.c.l.b16 %v506
    %v691 = vunpack.c.l.b16 %v507
    %v692 = vunpack.c.h.b16 %v507
    %v693 = vunpack.c.l.b16 %v508
    %v694 = vunpack.c.l.b16 %v509
    %v695 = vunpack.c.h.b16 %v509
    %v696 = vunpack.c.l.b16 %v510
    %v697 = vunpack.c.l.b16 %v511
    %v698 = vunpack.c.h.b16 %v511
    %v699 = vunpack.c.l.b16 %v512
    %v700 = vunpack.c.l.b16 %v513
    %v701 = vunpack.c.h.b16 %v513
    %v702 = vunpack.c.l.b16 %v514
    %v703 = vunpack.c.l.b16 %v515
    %v704 = vunpack.c.h.b16 %v515
    %v705 = vunpack.c.l.b16 %v516
    %v706 = vunpack.c.l.b16 %v517
    %v707 = vunpack.c.h.b16 %v517
    %v708 = vunpack.c.l.b16 %v518
    %v709 = vunpack.c.l.b16 %v519
    %v710 = vunpack.c.h.b16 %v519
    %v711 = vunpack.c.l.b16 %v520
    %v712 = vunpack.c.l.b16 %v521
    %v713 = vunpack.c.h.b16 %v521
    %v714 = vunpack.c.l.b16 %v522
    %v715 = vunpack.c.l.b16 %v523
    %v716 = vunpack.c.h.b16 %v523
    %v717 = vunpack.c.l.b16 %v524
    %v718 = vunpack.c.l.b16 %v525
    %v719 = vunpack.c.h.b16 %v525
    %v720 = vunpack.c.l.b16 %v526
    %v721 = vunpack.c.l.b16 %v527
    %v722 = vunpack.c.h.b16 %v527
    %v723 = vunpack.c.l.b16 %v528
    %v724 = vunpack.c.l.b16 %v529
    %v725 = vunpack.c.h.b16 %v529
    %v726 = vunpack.c.l.b16 %v530
    %v727 = vunpack.c.l.b16 %v531
    %v728 = vunpack.c.h.b16 %v531
    %v729 = vunpack.c.l.b16 %v532
    %v730 = vunpack.c.l.b16 %v533
    %v731 = vunpack.c.h.b16 %v533
    %v732 = vunpack.c.l.b16 %v534
    %v733 = vunpack.c.l.b16 %v535
    %v734 = vunpack.c.h.b16 %v535
    %v735 = vunpack.c.l.b16 %v536
    %v736 = vunpack.c.l.b16 %v537
    %v737 = vunpack.c.h.b16 %v537
    %v738 = vunpack.c.l.b16 %v538
    %v739 = vunpack.c.l.b16 %v539
    %v740 = vunpack.c.h.b16 %v539
    %v741 = vunpack.c.l.b16 %v540
    %v742 = vunpack.c.l.b16 %v541
    %v743 = vunpack.c.h.b16 %v541
    %v744 = vunpack.c.l.b16 %v542
    %v745 = vunpack.c.l.b16 %v543
    %v746 = vunpack.c.h.b16 %v543
    %v747 = vunpack.c.l.b16 %v544
    %v748 = vunpack.c.l.b16 %v545
    %v749 = vunpack.c.h.b16 %v545
    %v750 = vunpack.c.l.b16 %v546
    %v751 = vunpack.c.l.b16 %v547
    %v752 = vunpack.c.h.b16 %v547
    %v753 = vunpack.c.l.b16 %v548
    %v754 = vunpack.c.l.b16 %v549
    %v755 = vunpack.c.h.b16 %v549
    %v756 = vunpack.c.l.b16 %v550
    %v757 = vunpack.c.l.b16 %v551
    %v758 = vunpack.c.h.b16 %v551
    %v759 = vunpack.c.l.b16 %v552
    %v760 = vunpack.c.l.b16 %v553
    %v761 = vunpack.c.h.b16 %v553
    %v762 = vunpack.c.l.b16 %v554
    %v763 = vunpack.c.l.b16 %v555
    %v764 = vunpack.c.h.b16 %v555
    %v765 = vunpack.c.l.b16 %v556
    %v766 = vunpack.c.l.b16 %v557
    %v767 = vunpack.c.h.b16 %v557
    %v768 = vunpack.c.l.b16 %v558
    %v769 = vunpack.c.l.b16 %v559
    %v770 = vunpack.c.h.b16 %v559
    %v771 = vunpack.c.l.b16 %v560
    %v772 = vunpack.c.l.b16 %v561
    %v773 = vunpack.c.h.b16 %v561
    %v774 = vunpack.c.l.b16 %v562
    %v775 = vunpack.c.l.b16 %v563
    %v776 = vunpack.c.h.b16 %v563
    %v777 = vunpack.c.l.b16 %v564
    %v778 = vunpack.c.l.b16 %v565
    %v779 = vunpack.c.h.b16 %v565
    %v780 = vunpack.c.l.b16 %v566
    %v781 = vunpack.c.l.b16 %v567
    %v782 = vunpack.c.h.b16 %v567
    %v783 = vunpack.c.l.b16 %v568
    %v784 = vunpack.c.l.b16 %v569
    %v785 = vunpack.c.h.b16 %v569
    %v786 = vunpack.c.l.b16 %v570
    %v787 = vunpack.c.l.b16 %v571
    %v788 = vunpack.c.h.b16 %v571
    %v789 = vunpack.c.l.b16 %v572
    %v790 = vunpack.c.l.b16 %v573
    %v791 = vunpack.c.h.b16 %v573
    %v792 = vunpack.c.l.b16 %v574
    %v793 = vunpack.c.l.b16 %v575
    %v794 = vunpack.c.h.b16 %v575
    %v795 = vunpack.c.l.b16 %v576
    %v796 = vunpack.c.l.b16 %v577
    %v797 = vunpack.c.h.b16 %v577
    %v798 = vunpack.c.l.b16 %v578
    %v799 = vpack.c.b16 %v682, %v679
    %v800 = vpack.c.b16 %v683, %v680
    %v801 = vpack.c.b16 %v684, %v681
    %v802 = vpack.c.b16 %v688, %v685
    %v803 = vpack.c.b16 %v689, %v686
    %v804 = vpack.c.b16 %v690, %v687
    %v805 = vpack.c.b16 %v694, %v691
    %v806 = vpack.c.b16 %v695, %v692
    %v807 = vpack.c.b16 %v696, %v693
    %v808 = vpack.c.b16 %v700, %v697
    %v809 = vpack.c.b16 %v701, %v698
    %v810 = vpack.c.b16 %v702, %v699
    %v811 = vpack.c.b16 %v706, %v703
    %v812 = vpack.c.b16 %v707, %v704
    %v813 = vpack.c.b16 %v708, %v705
    %v814 = vpack.c.b16 %v712, %v709
    %v815 = vpack.c.b16 %v713, %v710
    %v816 = vpack.c.b16 %v714, %v711
    %v817 = vpack.c.b16 %v718, %v715
    %v818 = vpack.c.b16 %v719, %v716
    %v819 = vpack.c.b16 %v720, %v717
    %v820 = vpack.c.b16 %v724, %v721
    %v821 = vpack.c.b16 %v725, %v722
    %v822 = vpack.c.b16 %v726, %v723
    %v823 = vpack.c.b16 %v730, %v727
    %v824 = vpack.c.b16 %v731, %v728
    %v825 = vpack.c.b16 %v732, %v729
    %v826 = vpack.c.b16 %v736, %v733
    %v827 = vpack.c.b16 %v737, %v734
    %v828 = vpack.c.b16 %v738, %v735
    %v829 = vpack.c.b16 %v742, %v739
    %v830 = vpack.c.b16 %v743, %v740
    %v831 = vpack.c.b16 %v744, %v741
    %v832 = vpack.c.b16 %v748, %v745
    %v833 = vpack.c.b16 %v749, %v746
    %v834 = vpack.c.b16 %v750, %v747
    %v835 = vpack.c.b16 %v754, %v751
    %v836 = vpack.c.b16 %v755, %v752
    %v837 = vpack.c.b16 %v756, %v753
    %v838 = vpack.c.b16 %v760, %v757
    %v839 = vpack.c.b16 %v761, %v758
    %v840 = vpack.c.b16 %v762, %v759
    %v841 = vpack.c.b16 %v766, %v763
    %v842 = vpack.c.b16 %v767, %v764
    %v843 = vpack.c.b16 %v768, %v765
    %v844 = vpack.c.b16 %v772, %v769
    %v845 = vpack.c.b16 %v773, %v770
    %v846 = vpack.c.b16 %v774, %v771
    %v847 = vpack.c.b16 %v778, %v775
    %v848 = vpack.c.b16 %v779, %v776
    %v849 = vpack.c.b16 %v780, %v777
    %v850 = vpack.c.b16 %v784, %v781
    %v851 = vpack.c.b16 %v785, %v782
    %v852 = vpack.c.b16 %v786, %v783
    %v853 = vpack.c.b16 %v790, %v787
    %v854 = vpack.c.b16 %v791, %v788
    %v855 = vpack.c.b16 %v792, %v789
    %v856 = vpack.c.b16 %v796, %v793
    %v857 = vpack.c.b16 %v797, %v794
    %v858 = vpack.c.b16 %v798, %v795
    %vm899 = vcmask 523264
    %v901 = vsel %vm899, %v801, 0
    %v904 = vsel %vm899, %v804, 0
    %v907 = vsel %vm899, %v807, 0
    %v910 = vsel %vm899, %v810, 0
    %v913 = vsel %vm899, %v813, 0
    %v916 = vsel %vm899, %v816, 0
    %v919 = vsel %vm899, %v819, 0
    %v922 = vsel %vm899, %v822, 0
    %v925 = vsel %vm899, %v825, 0
    %v928 = vsel %vm899, %v828, 0
    %v931 = vsel %vm899, %v831, 0
    %v934 = vsel %vm899, %v834, 0
    %v937 = vsel %vm899, %v837, 0
    %v940 = vsel %vm899, %v840, 0
    %v943 = vsel %vm899, %v843, 0
    %v946 = vsel %vm899, %v846, 0
    %v949 = vsel %vm899, %v849, 0
    %v952 = vsel %vm899, %v852, 0
    %v955 = vsel %vm899, %v855, 0
    %v958 = vsel %vm899, %v858, 0
    %960 = vmatprep.subr.bf16.mxu0 0
    %961 = vmatpush1.bf16.msra.mxu0 %v586
    %962 = vmatprep.subr.bf16.mxu0 0
    %963 = vmatpush1.bf16.msra.mxu0 %v585
    %964 = vmatprep.subr.bf16.mxu0 0
    %965 = vmatpush1.bf16.msra.mxu0 %v584
    %966 = vmatprep.subr.bf16.mxu0 0
    %967 = vmatpush1.bf16.msra.mxu0 %v583
    %968 = vmatprep.subr.bf16.mxu0 0
    %969 = vmatpush1.bf16.msra.mxu0 %v582
    %970 = vmatprep.subr.bf16.mxu0 0
    %971 = vmatpush1.bf16.msra.mxu0 %v581
    %972 = vmatprep.subr.bf16.mxu0 0
    %973 = vmatpush1.bf16.msra.mxu0 %v580
    %974 = vmatprep.subr.bf16.mxu0 0
    %975 = vmatpush1.bf16.msra.mxu0 %v579
    %976 = vmatprep.subr.bf16.mxu0 0
    %977 = vmatpush2.bf16.msra.mxu0 %v594
    %978 = vmatprep.subr.bf16.mxu0 0
    %979 = vmatpush2.bf16.msra.mxu0 %v593
    %980 = vmatprep.subr.bf16.mxu0 0
    %981 = vmatpush2.bf16.msra.mxu0 %v592
    %982 = vmatprep.subr.bf16.mxu0 0
    %983 = vmatpush2.bf16.msra.mxu0 %v591
    %984 = vmatprep.subr.bf16.mxu0 0
    %985 = vmatpush2.bf16.msra.mxu0 %v590
    %986 = vmatprep.subr.bf16.mxu0 0
    %987 = vmatpush2.bf16.msra.mxu0 %v589
    %988 = vmatprep.subr.bf16.mxu0 0
    %989 = vmatpush2.bf16.msra.mxu0 %v588
    %990 = vmatprep.subr.bf16.mxu0 0
    %991 = vmatpush2.bf16.msra.mxu0 %v587
    %992 = vmatprep.mubr.bf16.mxu0 %v800
    %993 = vmatmul.mubr.bf16.gmra.mxu0 %v799
    %v994 = vpop.f32.mrf.mxu0
    %v995 = vadd.f32 0.0, %v994
    %v996 = vpop.f32.mrf.mxu0
    %v997 = vpop.f32.mrf.mxu0
    %v998 = vadd.f32 0.0, %v997
    %v999 = vpop.f32.mrf.mxu0
    %1000 = vmatprep.mubr.bf16.mxu0 %v803
    %1001 = vmatmul.mubr.bf16.gmra.mxu0 %v802
    %v1002 = vpop.f32.mrf.mxu0
    %v1003 = vadd.f32 0.0, %v1002
    %v1004 = vpop.f32.mrf.mxu0
    %v1005 = vpop.f32.mrf.mxu0
    %v1006 = vadd.f32 0.0, %v1005
    %v1007 = vpop.f32.mrf.mxu0
    %1008 = vmatprep.mubr.bf16.mxu0 %v806
    %1009 = vmatmul.mubr.bf16.gmra.mxu0 %v805
    %v1010 = vpop.f32.mrf.mxu0
    %v1011 = vadd.f32 0.0, %v1010
    %v1012 = vpop.f32.mrf.mxu0
    %v1013 = vpop.f32.mrf.mxu0
    %v1014 = vadd.f32 0.0, %v1013
    %v1015 = vpop.f32.mrf.mxu0
    %1016 = vmatprep.mubr.bf16.mxu0 %v809
    %1017 = vmatmul.mubr.bf16.gmra.mxu0 %v808
    %v1018 = vpop.f32.mrf.mxu0
    %v1019 = vadd.f32 0.0, %v1018
    %v1020 = vpop.f32.mrf.mxu0
    %v1021 = vpop.f32.mrf.mxu0
    %v1022 = vadd.f32 0.0, %v1021
    %v1023 = vpop.f32.mrf.mxu0
    %1024 = vmatprep.mubr.bf16.mxu0 %v812
    %1025 = vmatmul.mubr.bf16.gmra.mxu0 %v811
    %v1026 = vpop.f32.mrf.mxu0
    %v1027 = vadd.f32 0.0, %v1026
    %v1028 = vpop.f32.mrf.mxu0
    %v1029 = vpop.f32.mrf.mxu0
    %v1030 = vadd.f32 0.0, %v1029
    %v1031 = vpop.f32.mrf.mxu0
    %1032 = vmatprep.mubr.bf16.mxu0 %v815
    %1033 = vmatmul.mubr.bf16.gmra.mxu0 %v814
    %v1034 = vpop.f32.mrf.mxu0
    %v1035 = vadd.f32 0.0, %v1034
    %v1036 = vpop.f32.mrf.mxu0
    %v1037 = vpop.f32.mrf.mxu0
    %v1038 = vadd.f32 0.0, %v1037
    %v1039 = vpop.f32.mrf.mxu0
    %1040 = vmatprep.mubr.bf16.mxu0 %v818
    %1041 = vmatmul.mubr.bf16.gmra.mxu0 %v817
    %v1042 = vpop.f32.mrf.mxu0
    %v1043 = vadd.f32 0.0, %v1042
    %v1044 = vpop.f32.mrf.mxu0
    %v1045 = vpop.f32.mrf.mxu0
    %v1046 = vadd.f32 0.0, %v1045
    %v1047 = vpop.f32.mrf.mxu0
    %1048 = vmatprep.mubr.bf16.mxu0 %v821
    %1049 = vmatmul.mubr.bf16.gmra.mxu0 %v820
    %v1050 = vpop.f32.mrf.mxu0
    %v1051 = vadd.f32 0.0, %v1050
    %v1052 = vpop.f32.mrf.mxu0
    %v1053 = vpop.f32.mrf.mxu0
    %v1054 = vadd.f32 0.0, %v1053
    %v1055 = vpop.f32.mrf.mxu0
    %1056 = vmatprep.mubr.bf16.mxu0 %v824
    %1057 = vmatmul.mubr.bf16.gmra.mxu0 %v823
    %v1058 = vpop.f32.mrf.mxu0
    %v1059 = vadd.f32 0.0, %v1058
    %v1060 = vpop.f32.mrf.mxu0
    %v1061 = vpop.f32.mrf.mxu0
    %v1062 = vadd.f32 0.0, %v1061
    %v1063 = vpop.f32.mrf.mxu0
    %1064 = vmatprep.mubr.bf16.mxu0 %v827
    %1065 = vmatmul.mubr.bf16.gmra.mxu0 %v826
    %v1066 = vpop.f32.mrf.mxu0
    %v1067 = vadd.f32 0.0, %v1066
    %v1068 = vpop.f32.mrf.mxu0
    %v1069 = vpop.f32.mrf.mxu0
    %v1070 = vadd.f32 0.0, %v1069
    %v1071 = vpop.f32.mrf.mxu0
    %1072 = vmatprep.mubr.bf16.mxu0 %v830
    %1073 = vmatmul.mubr.bf16.gmra.mxu0 %v829
    %v1074 = vpop.f32.mrf.mxu0
    %v1075 = vadd.f32 0.0, %v1074
    %v1076 = vpop.f32.mrf.mxu0
    %v1077 = vpop.f32.mrf.mxu0
    %v1078 = vadd.f32 0.0, %v1077
    %v1079 = vpop.f32.mrf.mxu0
    %1080 = vmatprep.mubr.bf16.mxu0 %v833
    %1081 = vmatmul.mubr.bf16.gmra.mxu0 %v832
    %v1082 = vpop.f32.mrf.mxu0
    %v1083 = vadd.f32 0.0, %v1082
    %v1084 = vpop.f32.mrf.mxu0
    %v1085 = vpop.f32.mrf.mxu0
    %v1086 = vadd.f32 0.0, %v1085
    %v1087 = vpop.f32.mrf.mxu0
    %1088 = vmatprep.mubr.bf16.mxu0 %v836
    %1089 = vmatmul.mubr.bf16.gmra.mxu0 %v835
    %v1090 = vpop.f32.mrf.mxu0
    %v1091 = vadd.f32 0.0, %v1090
    %v1092 = vpop.f32.mrf.mxu0
    %v1093 = vpop.f32.mrf.mxu0
    %v1094 = vadd.f32 0.0, %v1093
    %v1095 = vpop.f32.mrf.mxu0
    %1096 = vmatprep.mubr.bf16.mxu0 %v839
    %1097 = vmatmul.mubr.bf16.gmra.mxu0 %v838
    %v1098 = vpop.f32.mrf.mxu0
    %v1099 = vadd.f32 0.0, %v1098
    %v1100 = vpop.f32.mrf.mxu0
    %v1101 = vpop.f32.mrf.mxu0
    %v1102 = vadd.f32 0.0, %v1101
    %v1103 = vpop.f32.mrf.mxu0
    %1104 = vmatprep.mubr.bf16.mxu0 %v842
    %1105 = vmatmul.mubr.bf16.gmra.mxu0 %v841
    %v1106 = vpop.f32.mrf.mxu0
    %v1107 = vadd.f32 0.0, %v1106
    %v1108 = vpop.f32.mrf.mxu0
    %v1109 = vpop.f32.mrf.mxu0
    %v1110 = vadd.f32 0.0, %v1109
    %v1111 = vpop.f32.mrf.mxu0
    %1112 = vmatprep.mubr.bf16.mxu0 %v845
    %1113 = vmatmul.mubr.bf16.gmra.mxu0 %v844
    %v1114 = vpop.f32.mrf.mxu0
    %v1115 = vadd.f32 0.0, %v1114
    %v1116 = vpop.f32.mrf.mxu0
    %v1117 = vpop.f32.mrf.mxu0
    %v1118 = vadd.f32 0.0, %v1117
    %v1119 = vpop.f32.mrf.mxu0
    %1120 = vmatprep.mubr.bf16.mxu0 %v848
    %1121 = vmatmul.mubr.bf16.gmra.mxu0 %v847
    %v1122 = vpop.f32.mrf.mxu0
    %v1123 = vadd.f32 0.0, %v1122
    %v1124 = vpop.f32.mrf.mxu0
    %v1125 = vpop.f32.mrf.mxu0
    %v1126 = vadd.f32 0.0, %v1125
    %v1127 = vpop.f32.mrf.mxu0
    %1128 = vmatprep.mubr.bf16.mxu0 %v851
    %1129 = vmatmul.mubr.bf16.gmra.mxu0 %v850
    %v1130 = vpop.f32.mrf.mxu0
    %v1131 = vadd.f32 0.0, %v1130
    %v1132 = vpop.f32.mrf.mxu0
    %v1133 = vpop.f32.mrf.mxu0
    %v1134 = vadd.f32 0.0, %v1133
    %v1135 = vpop.f32.mrf.mxu0
    %1136 = vmatprep.mubr.bf16.mxu0 %v854
    %1137 = vmatmul.mubr.bf16.gmra.mxu0 %v853
    %v1138 = vpop.f32.mrf.mxu0
    %v1139 = vadd.f32 0.0, %v1138
    %v1140 = vpop.f32.mrf.mxu0
    %v1141 = vpop.f32.mrf.mxu0
    %v1142 = vadd.f32 0.0, %v1141
    %v1143 = vpop.f32.mrf.mxu0
    %1144 = vmatprep.mubr.bf16.mxu0 %v857
    %1145 = vmatmul.mubr.bf16.gmra.mxu0 %v856
    %v1146 = vpop.f32.mrf.mxu0
    %v1147 = vadd.f32 0.0, %v1146
    %v1148 = vpop.f32.mrf.mxu0
    %v1149 = vpop.f32.mrf.mxu0
    %v1150 = vadd.f32 0.0, %v1149
    %v1151 = vpop.f32.mrf.mxu0
    %1152 = vdwg.mxu0
    %1153 = vmatprep.subr.bf16.mxu0 0
    %1154 = vmatpush1.bf16.msra.mxu0 0
    %1155 = vmatprep.subr.bf16.mxu0 0
    %1156 = vmatpush1.bf16.msra.mxu0 0
    %1157 = vmatprep.subr.bf16.mxu0 0
    %1158 = vmatpush1.bf16.msra.mxu0 0
    %1159 = vmatprep.subr.bf16.mxu0 0
    %1160 = vmatpush1.bf16.msra.mxu0 0
    %1161 = vmatprep.subr.bf16.mxu0 0
    %1162 = vmatpush1.bf16.msra.mxu0 %v598
    %1163 = vmatprep.subr.bf16.mxu0 0
    %1164 = vmatpush1.bf16.msra.mxu0 %v597
    %1165 = vmatprep.subr.bf16.mxu0 0
    %1166 = vmatpush1.bf16.msra.mxu0 %v596
    %1167 = vmatprep.subr.bf16.mxu0 0
    %1168 = vmatpush1.bf16.msra.mxu0 %v595
    %1169 = vmatprep.subr.bf16.mxu0 0
    %1170 = vmatpush2.bf16.msra.mxu0 0
    %1171 = vmatprep.subr.bf16.mxu0 0
    %1172 = vmatpush2.bf16.msra.mxu0 0
    %1173 = vmatprep.subr.bf16.mxu0 0
    %1174 = vmatpush2.bf16.msra.mxu0 0
    %1175 = vmatprep.subr.bf16.mxu0 0
    %1176 = vmatpush2.bf16.msra.mxu0 0
    %1177 = vmatprep.subr.bf16.mxu0 0
    %1178 = vmatpush2.bf16.msra.mxu0 0
    %1179 = vmatprep.subr.bf16.mxu0 0
    %1180 = vmatpush2.bf16.msra.mxu0 0
    %1181 = vmatprep.subr.bf16.mxu0 0
    %1182 = vmatpush2.bf16.msra.mxu0 0
    %1183 = vmatprep.subr.bf16.mxu0 0
    %1184 = vmatpush2.bf16.msra.mxu0 0
    %1185 = vmatprep.mubr.bf16.mxu0 0
    %1186 = vmatmul.mubr.bf16.gmra.mxu0 %v901
    %v1187 = vpop.f32.mrf.mxu0
    %v1188 = vadd.f32 %v995, %v1187
    %v1189 = vpop.f32.mrf.mxu0
    %v1190 = vpop.f32.mrf.mxu0
    %v1191 = vadd.f32 %v998, %v1190
    %v1192 = vpop.f32.mrf.mxu0
    %1193 = vmatprep.mubr.bf16.mxu0 0
    %1194 = vmatmul.mubr.bf16.gmra.mxu0 %v904
    %v1195 = vpop.f32.mrf.mxu0
    %v1196 = vadd.f32 %v1003, %v1195
    %v1197 = vpop.f32.mrf.mxu0
    %v1198 = vpop.f32.mrf.mxu0
    %v1199 = vadd.f32 %v1006, %v1198
    %v1200 = vpop.f32.mrf.mxu0
    %1201 = vmatprep.mubr.bf16.mxu0 0
    %1202 = vmatmul.mubr.bf16.gmra.mxu0 %v907
    %v1203 = vpop.f32.mrf.mxu0
    %v1204 = vadd.f32 %v1011, %v1203
    %v1205 = vpop.f32.mrf.mxu0
    %v1206 = vpop.f32.mrf.mxu0
    %v1207 = vadd.f32 %v1014, %v1206
    %v1208 = vpop.f32.mrf.mxu0
    %1209 = vmatprep.mubr.bf16.mxu0 0
    %1210 = vmatmul.mubr.bf16.gmra.mxu0 %v910
    %v1211 = vpop.f32.mrf.mxu0
    %v1212 = vadd.f32 %v1019, %v1211
    %v1213 = vpop.f32.mrf.mxu0
    %v1214 = vpop.f32.mrf.mxu0
    %v1215 = vadd.f32 %v1022, %v1214
    %v1216 = vpop.f32.mrf.mxu0
    %1217 = vmatprep.mubr.bf16.mxu0 0
    %1218 = vmatmul.mubr.bf16.gmra.mxu0 %v913
    %v1219 = vpop.f32.mrf.mxu0
    %v1220 = vadd.f32 %v1027, %v1219
    %v1221 = vpop.f32.mrf.mxu0
    %v1222 = vpop.f32.mrf.mxu0
    %v1223 = vadd.f32 %v1030, %v1222
    %v1224 = vpop.f32.mrf.mxu0
    %1225 = vmatprep.mubr.bf16.mxu0 0
    %1226 = vmatmul.mubr.bf16.gmra.mxu0 %v916
    %v1227 = vpop.f32.mrf.mxu0
    %v1228 = vadd.f32 %v1035, %v1227
    %v1229 = vpop.f32.mrf.mxu0
    %v1230 = vpop.f32.mrf.mxu0
    %v1231 = vadd.f32 %v1038, %v1230
    %v1232 = vpop.f32.mrf.mxu0
    %1233 = vmatprep.mubr.bf16.mxu0 0
    %1234 = vmatmul.mubr.bf16.gmra.mxu0 %v919
    %v1235 = vpop.f32.mrf.mxu0
    %v1236 = vadd.f32 %v1043, %v1235
    %v1237 = vpop.f32.mrf.mxu0
    %v1238 = vpop.f32.mrf.mxu0
    %v1239 = vadd.f32 %v1046, %v1238
    %v1240 = vpop.f32.mrf.mxu0
    %1241 = vmatprep.mubr.bf16.mxu0 0
    %1242 = vmatmul.mubr.bf16.gmra.mxu0 %v922
    %v1243 = vpop.f32.mrf.mxu0
    %v1244 = vadd.f32 %v1051, %v1243
    %v1245 = vpop.f32.mrf.mxu0
    %v1246 = vpop.f32.mrf.mxu0
    %v1247 = vadd.f32 %v1054, %v1246
    %v1248 = vpop.f32.mrf.mxu0
    %1249 = vmatprep.mubr.bf16.mxu0 0
    %1250 = vmatmul.mubr.bf16.gmra.mxu0 %v925
    %v1251 = vpop.f32.mrf.mxu0
    %v1252 = vadd.f32 %v1059, %v1251
    %v1253 = vpop.f32.mrf.mxu0
    %v1254 = vpop.f32.mrf.mxu0
    %v1255 = vadd.f32 %v1062, %v1254
    %v1256 = vpop.f32.mrf.mxu0
    %1257 = vmatprep.mubr.bf16.mxu0 0
    %1258 = vmatmul.mubr.bf16.gmra.mxu0 %v928
    %v1259 = vpop.f32.mrf.mxu0
    %v1260 = vadd.f32 %v1067, %v1259
    %v1261 = vpop.f32.mrf.mxu0
    %v1262 = vpop.f32.mrf.mxu0
    %v1263 = vadd.f32 %v1070, %v1262
    %v1264 = vpop.f32.mrf.mxu0
    %1265 = vmatprep.mubr.bf16.mxu0 0
    %1266 = vmatmul.mubr.bf16.gmra.mxu0 %v931
    %v1267 = vpop.f32.mrf.mxu0
    %v1268 = vadd.f32 %v1075, %v1267
    %v1269 = vpop.f32.mrf.mxu0
    %v1270 = vpop.f32.mrf.mxu0
    %v1271 = vadd.f32 %v1078, %v1270
    %v1272 = vpop.f32.mrf.mxu0
    %1273 = vmatprep.mubr.bf16.mxu0 0
    %1274 = vmatmul.mubr.bf16.gmra.mxu0 %v934
    %v1275 = vpop.f32.mrf.mxu0
    %v1276 = vadd.f32 %v1083, %v1275
    %v1277 = vpop.f32.mrf.mxu0
    %v1278 = vpop.f32.mrf.mxu0
    %v1279 = vadd.f32 %v1086, %v1278
    %v1280 = vpop.f32.mrf.mxu0
    %1281 = vmatprep.mubr.bf16.mxu0 0
    %1282 = vmatmul.mubr.bf16.gmra.mxu0 %v937
    %v1283 = vpop.f32.mrf.mxu0
    %v1284 = vadd.f32 %v1091, %v1283
    %v1285 = vpop.f32.mrf.mxu0
    %v1286 = vpop.f32.mrf.mxu0
    %v1287 = vadd.f32 %v1094, %v1286
    %v1288 = vpop.f32.mrf.mxu0
    %1289 = vmatprep.mubr.bf16.mxu0 0
    %1290 = vmatmul.mubr.bf16.gmra.mxu0 %v940
    %v1291 = vpop.f32.mrf.mxu0
    %v1292 = vadd.f32 %v1099, %v1291
    %v1293 = vpop.f32.mrf.mxu0
    %v1294 = vpop.f32.mrf.mxu0
    %v1295 = vadd.f32 %v1102, %v1294
    %v1296 = vpop.f32.mrf.mxu0
    %1297 = vmatprep.mubr.bf16.mxu0 0
    %1298 = vmatmul.mubr.bf16.gmra.mxu0 %v943
    %v1299 = vpop.f32.mrf.mxu0
    %v1300 = vadd.f32 %v1107, %v1299
    %v1301 = vpop.f32.mrf.mxu0
    %v1302 = vpop.f32.mrf.mxu0
    %v1303 = vadd.f32 %v1110, %v1302
    %v1304 = vpop.f32.mrf.mxu0
    %1305 = vmatprep.mubr.bf16.mxu0 0
    %1306 = vmatmul.mubr.bf16.gmra.mxu0 %v946
    %v1307 = vpop.f32.mrf.mxu0
    %v1308 = vadd.f32 %v1115, %v1307
    %v1309 = vpop.f32.mrf.mxu0
    %v1310 = vpop.f32.mrf.mxu0
    %v1311 = vadd.f32 %v1118, %v1310
    %v1312 = vpop.f32.mrf.mxu0
    %1313 = vmatprep.mubr.bf16.mxu0 0
    %1314 = vmatmul.mubr.bf16.gmra.mxu0 %v949
    %v1315 = vpop.f32.mrf.mxu0
    %v1316 = vadd.f32 %v1123, %v1315
    %v1317 = vpop.f32.mrf.mxu0
    %v1318 = vpop.f32.mrf.mxu0
    %v1319 = vadd.f32 %v1126, %v1318
    %v1320 = vpop.f32.mrf.mxu0
    %1321 = vmatprep.mubr.bf16.mxu0 0
    %1322 = vmatmul.mubr.bf16.gmra.mxu0 %v952
    %v1323 = vpop.f32.mrf.mxu0
    %v1324 = vadd.f32 %v1131, %v1323
    %v1325 = vpop.f32.mrf.mxu0
    %v1326 = vpop.f32.mrf.mxu0
    %v1327 = vadd.f32 %v1134, %v1326
    %v1328 = vpop.f32.mrf.mxu0
    %1329 = vmatprep.mubr.bf16.mxu0 0
    %1330 = vmatmul.mubr.bf16.gmra.mxu0 %v955
    %v1331 = vpop.f32.mrf.mxu0
    %v1332 = vadd.f32 %v1139, %v1331
    %v1333 = vpop.f32.mrf.mxu0
    %v1334 = vpop.f32.mrf.mxu0
    %v1335 = vadd.f32 %v1142, %v1334
    %v1336 = vpop.f32.mrf.mxu0
    %1337 = vmatprep.mubr.bf16.mxu0 0
    %1338 = vmatmul.mubr.bf16.gmra.mxu0 %v958
    %v1339 = vpop.f32.mrf.mxu0
    %v1340 = vadd.f32 %v1147, %v1339
    %v1341 = vpop.f32.mrf.mxu0
    %v1342 = vpop.f32.mrf.mxu0
    %v1343 = vadd.f32 %v1150, %v1342
    %v1344 = vpop.f32.mrf.mxu0
    %1345 = vdwg.mxu0
    %v1346 = vpack.c.bf16 %v1191, %v1188
    %v1347 = vpack.c.bf16 %v1199, %v1196
    %v1348 = vpack.c.bf16 %v1207, %v1204
    %v1349 = vpack.c.bf16 %v1215, %v1212
    %v1350 = vpack.c.bf16 %v1223, %v1220
    %v1351 = vpack.c.bf16 %v1231, %v1228
    %v1352 = vpack.c.bf16 %v1239, %v1236
    %v1353 = vpack.c.bf16 %v1247, %v1244
    %v1354 = vpack.c.bf16 %v1255, %v1252
    %v1355 = vpack.c.bf16 %v1263, %v1260
    %v1356 = vpack.c.bf16 %v1271, %v1268
    %v1357 = vpack.c.bf16 %v1279, %v1276
    %v1358 = vpack.c.bf16 %v1287, %v1284
    %v1359 = vpack.c.bf16 %v1295, %v1292
    %v1360 = vpack.c.bf16 %v1303, %v1300
    %v1361 = vpack.c.bf16 %v1311, %v1308
    %v1362 = vpack.c.bf16 %v1319, %v1316
    %v1363 = vpack.c.bf16 %v1327, %v1324
    %v1364 = vpack.c.bf16 %v1335, %v1332
    %v1365 = vpack.c.bf16 %v1343, %v1340
    %v1366 = vld [vmem:[%s5] sm:$0xf]
    %v1367 = vld [vmem:[%s5 + $0x4] sm:$0xf]
    %v1368 = vld [vmem:[%s5 + $0x8] sm:$0xf]
    %v1369 = vld [vmem:[%s5 + $0xc] sm:$0xf]
    %v1370 = vld [vmem:[%s5 + $0x10] sm:$0xf]
    %v1371 = vld [vmem:[%s5 + $0x14] sm:$0xf]
    %v1372 = vld [vmem:[%s5 + $0x18] sm:$0xf]
    %v1373 = vld [vmem:[%s5 + $0x1c] sm:$0xf]
    %v1374 = vld [vmem:[%s5 + $0x20] sm:$0xf]
    %v1375 = vld [vmem:[%s5 + $0x24] sm:$0xf]
    %v1376 = vld [vmem:[%s5 + $0x28] sm:$0xf]
    %v1377 = vld [vmem:[%s5 + $0x2c] sm:$0xf]
    %v1378 = vld [vmem:[%s5 + $0x30] sm:$0xf]
    %v1379 = vld [vmem:[%s5 + $0x34] sm:$0xf]
    %v1380 = vld [vmem:[%s5 + $0x38] sm:$0xf]
    %v1381 = vld [vmem:[%s5 + $0x3c] sm:$0xf]
    %v1382 = vld [vmem:[%s5 + $0x40] sm:$0xf]
    %v1383 = vld [vmem:[%s5 + $0x44] sm:$0xf]
    %v1384 = vld [vmem:[%s5 + $0x48] sm:$0xf]
    %v1385 = vld [vmem:[%s5 + $0x4c] sm:$0xf]
    %v1386 = vld [vmem:[%s5 + $0x50] sm:$0xf]
    %v1387 = vld [vmem:[%s5 + $0x54] sm:$0xf]
    %v1388 = vld [vmem:[%s5 + $0x58] sm:$0xf]
    %v1389 = vld [vmem:[%s5 + $0x5c] sm:$0xf]
    %v1390 = vld [vmem:[%s5 + $0x60] sm:$0xf]
    %v1391 = vld [vmem:[%s5 + $0x64] sm:$0xf]
    %v1392 = vld [vmem:[%s5 + $0x68] sm:$0xf]
    %v1393 = vld [vmem:[%s5 + $0x6c] sm:$0xf]
    %v1394 = vld [vmem:[%s5 + $0x70] sm:$0xf]
    %v1395 = vld [vmem:[%s5 + $0x74] sm:$0xf]
    %v1396 = vld [vmem:[%s5 + $0x78] sm:$0xf]
    %v1397 = vld [vmem:[%s5 + $0x7c] sm:$0xf]
    %v1398 = vld [vmem:[%s6] sm:$0x1]
    %v1400 = vlaneseq
    %v1401 = vshrl.u32 %v1400, 7
    %v1402 = vsub.s32 0, %v1401
    %v1403 = vrot.slane %v1398, %v1402
    %v1437 = vunpack.c.l.b16 %v1366
    %v1438 = vunpack.c.l.b16 %v1367
    %v1439 = vunpack.c.l.b16 %v1368
    %v1440 = vunpack.c.l.b16 %v1369
    %v1441 = vunpack.c.l.b16 %v1370
    %v1442 = vunpack.c.l.b16 %v1371
    %v1443 = vunpack.c.l.b16 %v1372
    %v1444 = vunpack.c.l.b16 %v1373
    %v1445 = vunpack.c.l.b16 %v1374
    %v1446 = vunpack.c.l.b16 %v1375
    %v1447 = vunpack.c.l.b16 %v1376
    %v1448 = vunpack.c.l.b16 %v1377
    %v1449 = vunpack.c.l.b16 %v1378
    %v1450 = vunpack.c.l.b16 %v1379
    %v1451 = vunpack.c.l.b16 %v1380
    %v1452 = vunpack.c.l.b16 %v1381
    %v1453 = vunpack.c.l.b16 %v1382
    %v1454 = vunpack.c.l.b16 %v1383
    %v1455 = vunpack.c.l.b16 %v1384
    %v1456 = vunpack.c.l.b16 %v1385
    %v1457 = vunpack.c.l.b16 %v1386
    %v1458 = vunpack.c.l.b16 %v1387
    %v1459 = vunpack.c.l.b16 %v1388
    %v1460 = vunpack.c.l.b16 %v1389
    %v1461 = vunpack.c.l.b16 %v1390
    %v1462 = vunpack.c.l.b16 %v1391
    %v1463 = vunpack.c.l.b16 %v1392
    %v1464 = vunpack.c.l.b16 %v1393
    %v1465 = vunpack.c.l.b16 %v1394
    %v1466 = vunpack.c.l.b16 %v1395
    %v1467 = vunpack.c.l.b16 %v1396
    %v1468 = vunpack.c.l.b16 %v1397
    %v1469 = vpack.c.b16 %v1438, %v1437
    %v1470 = vpack.c.b16 %v1440, %v1439
    %v1471 = vpack.c.b16 %v1442, %v1441
    %v1472 = vpack.c.b16 %v1444, %v1443
    %v1473 = vpack.c.b16 %v1446, %v1445
    %v1474 = vpack.c.b16 %v1448, %v1447
    %v1475 = vpack.c.b16 %v1450, %v1449
    %v1476 = vpack.c.b16 %v1452, %v1451
    %v1477 = vpack.c.b16 %v1454, %v1453
    %v1478 = vpack.c.b16 %v1456, %v1455
    %v1479 = vpack.c.b16 %v1458, %v1457
    %v1480 = vpack.c.b16 %v1460, %v1459
    %v1481 = vpack.c.b16 %v1462, %v1461
    %v1482 = vpack.c.b16 %v1464, %v1463
    %v1483 = vpack.c.b16 %v1466, %v1465
    %v1484 = vpack.c.b16 %v1468, %v1467
    %1501 = vmatprep.subr.bf16.mxu0 0
    %1502 = vmatpush1.bf16.msra.mxu0 %v1476
    %1503 = vmatprep.subr.bf16.mxu0 0
    %1504 = vmatpush1.bf16.msra.mxu0 %v1475
    %1505 = vmatprep.subr.bf16.mxu0 0
    %1506 = vmatpush1.bf16.msra.mxu0 %v1474
    %1507 = vmatprep.subr.bf16.mxu0 0
    %1508 = vmatpush1.bf16.msra.mxu0 %v1473
    %1509 = vmatprep.subr.bf16.mxu0 0
    %1510 = vmatpush1.bf16.msra.mxu0 %v1472
    %1511 = vmatprep.subr.bf16.mxu0 0
    %1512 = vmatpush1.bf16.msra.mxu0 %v1471
    %1513 = vmatprep.subr.bf16.mxu0 0
    %1514 = vmatpush1.bf16.msra.mxu0 %v1470
    %1515 = vmatprep.subr.bf16.mxu0 0
    %1516 = vmatpush1.bf16.msra.mxu0 %v1469
    %1517 = vmatprep.subr.bf16.mxu0 0
    %1518 = vmatpush2.bf16.msra.mxu0 %v1484
    %1519 = vmatprep.subr.bf16.mxu0 0
    %1520 = vmatpush2.bf16.msra.mxu0 %v1483
    %1521 = vmatprep.subr.bf16.mxu0 0
    %1522 = vmatpush2.bf16.msra.mxu0 %v1482
    %1523 = vmatprep.subr.bf16.mxu0 0
    %1524 = vmatpush2.bf16.msra.mxu0 %v1481
    %1525 = vmatprep.subr.bf16.mxu0 0
    %1526 = vmatpush2.bf16.msra.mxu0 %v1480
    %1527 = vmatprep.subr.bf16.mxu0 0
    %1528 = vmatpush2.bf16.msra.mxu0 %v1479
    %1529 = vmatprep.subr.bf16.mxu0 0
    %1530 = vmatpush2.bf16.msra.mxu0 %v1478
    %1531 = vmatprep.subr.bf16.mxu0 0
    %1532 = vmatpush2.bf16.msra.mxu0 %v1477
    %1533 = vmatprep.mubr.bf16.mxu0 %v579
    %1534 = vmatmul.mubr.bf16.gmra.mxu0 %v1346
    %v1535 = vpop.f32.mrf.mxu0
    %v1536 = vadd.f32 %v1403, %v1535
    %v1537 = vpop.f32.mrf.mxu0
    %v1538 = vpop.f32.mrf.mxu0
    %v1539 = vadd.f32 %v1403, %v1538
    %v1540 = vpop.f32.mrf.mxu0
    %1541 = vmatprep.mubr.bf16.mxu0 %v580
    %1542 = vmatmul.mubr.bf16.gmra.mxu0 %v1347
    %v1543 = vpop.f32.mrf.mxu0
    %v1544 = vadd.f32 %v1403, %v1543
    %v1545 = vpop.f32.mrf.mxu0
    %v1546 = vpop.f32.mrf.mxu0
    %v1547 = vadd.f32 %v1403, %v1546
    %v1548 = vpop.f32.mrf.mxu0
    %1549 = vmatprep.mubr.bf16.mxu0 %v581
    %1550 = vmatmul.mubr.bf16.gmra.mxu0 %v1348
    %v1551 = vpop.f32.mrf.mxu0
    %v1552 = vadd.f32 %v1403, %v1551
    %v1553 = vpop.f32.mrf.mxu0
    %v1554 = vpop.f32.mrf.mxu0
    %v1555 = vadd.f32 %v1403, %v1554
    %v1556 = vpop.f32.mrf.mxu0
    %1557 = vmatprep.mubr.bf16.mxu0 %v582
    %1558 = vmatmul.mubr.bf16.gmra.mxu0 %v1349
    %v1559 = vpop.f32.mrf.mxu0
    %v1560 = vadd.f32 %v1403, %v1559
    %v1561 = vpop.f32.mrf.mxu0
    %v1562 = vpop.f32.mrf.mxu0
    %v1563 = vadd.f32 %v1403, %v1562
    %v1564 = vpop.f32.mrf.mxu0
    %1565 = vmatprep.mubr.bf16.mxu0 %v583
    %1566 = vmatmul.mubr.bf16.gmra.mxu0 %v1350
    %v1567 = vpop.f32.mrf.mxu0
    %v1568 = vadd.f32 %v1403, %v1567
    %v1569 = vpop.f32.mrf.mxu0
    %v1570 = vpop.f32.mrf.mxu0
    %v1571 = vadd.f32 %v1403, %v1570
    %v1572 = vpop.f32.mrf.mxu0
    %1573 = vmatprep.mubr.bf16.mxu0 %v584
    %1574 = vmatmul.mubr.bf16.gmra.mxu0 %v1351
    %v1575 = vpop.f32.mrf.mxu0
    %v1576 = vadd.f32 %v1403, %v1575
    %v1577 = vpop.f32.mrf.mxu0
    %v1578 = vpop.f32.mrf.mxu0
    %v1579 = vadd.f32 %v1403, %v1578
    %v1580 = vpop.f32.mrf.mxu0
    %1581 = vmatprep.mubr.bf16.mxu0 %v585
    %1582 = vmatmul.mubr.bf16.gmra.mxu0 %v1352
    %v1583 = vpop.f32.mrf.mxu0
    %v1584 = vadd.f32 %v1403, %v1583
    %v1585 = vpop.f32.mrf.mxu0
    %v1586 = vpop.f32.mrf.mxu0
    %v1587 = vadd.f32 %v1403, %v1586
    %v1588 = vpop.f32.mrf.mxu0
    %1589 = vmatprep.mubr.bf16.mxu0 %v586
    %1590 = vmatmul.mubr.bf16.gmra.mxu0 %v1353
    %v1591 = vpop.f32.mrf.mxu0
    %v1592 = vadd.f32 %v1403, %v1591
    %v1593 = vpop.f32.mrf.mxu0
    %v1594 = vpop.f32.mrf.mxu0
    %v1595 = vadd.f32 %v1403, %v1594
    %v1596 = vpop.f32.mrf.mxu0
    %1597 = vmatprep.mubr.bf16.mxu0 %v587
    %1598 = vmatmul.mubr.bf16.gmra.mxu0 %v1354
    %v1599 = vpop.f32.mrf.mxu0
    %v1600 = vadd.f32 %v1403, %v1599
    %v1601 = vpop.f32.mrf.mxu0
    %v1602 = vpop.f32.mrf.mxu0
    %v1603 = vadd.f32 %v1403, %v1602
    %v1604 = vpop.f32.mrf.mxu0
    %1605 = vmatprep.mubr.bf16.mxu0 %v588
    %1606 = vmatmul.mubr.bf16.gmra.mxu0 %v1355
    %v1607 = vpop.f32.mrf.mxu0
    %v1608 = vadd.f32 %v1403, %v1607
    %v1609 = vpop.f32.mrf.mxu0
    %v1610 = vpop.f32.mrf.mxu0
    %v1611 = vadd.f32 %v1403, %v1610
    %v1612 = vpop.f32.mrf.mxu0
    %1613 = vmatprep.mubr.bf16.mxu0 %v589
    %1614 = vmatmul.mubr.bf16.gmra.mxu0 %v1356
    %v1615 = vpop.f32.mrf.mxu0
    %v1616 = vadd.f32 %v1403, %v1615
    %v1617 = vpop.f32.mrf.mxu0
    %v1618 = vpop.f32.mrf.mxu0
    %v1619 = vadd.f32 %v1403, %v1618
    %v1620 = vpop.f32.mrf.mxu0
    %1621 = vmatprep.mubr.bf16.mxu0 %v590
    %1622 = vmatmul.mubr.bf16.gmra.mxu0 %v1357
    %v1623 = vpop.f32.mrf.mxu0
    %v1624 = vadd.f32 %v1403, %v1623
    %v1625 = vpop.f32.mrf.mxu0
    %v1626 = vpop.f32.mrf.mxu0
    %v1627 = vadd.f32 %v1403, %v1626
    %v1628 = vpop.f32.mrf.mxu0
    %1629 = vmatprep.mubr.bf16.mxu0 %v591
    %1630 = vmatmul.mubr.bf16.gmra.mxu0 %v1358
    %v1631 = vpop.f32.mrf.mxu0
    %v1632 = vadd.f32 %v1403, %v1631
    %v1633 = vpop.f32.mrf.mxu0
    %v1634 = vpop.f32.mrf.mxu0
    %v1635 = vadd.f32 %v1403, %v1634
    %v1636 = vpop.f32.mrf.mxu0
    %1637 = vmatprep.mubr.bf16.mxu0 %v592
    %1638 = vmatmul.mubr.bf16.gmra.mxu0 %v1359
    %v1639 = vpop.f32.mrf.mxu0
    %v1640 = vadd.f32 %v1403, %v1639
    %v1641 = vpop.f32.mrf.mxu0
    %v1642 = vpop.f32.mrf.mxu0
    %v1643 = vadd.f32 %v1403, %v1642
    %v1644 = vpop.f32.mrf.mxu0
    %1645 = vmatprep.mubr.bf16.mxu0 %v593
    %1646 = vmatmul.mubr.bf16.gmra.mxu0 %v1360
    %v1647 = vpop.f32.mrf.mxu0
    %v1648 = vadd.f32 %v1403, %v1647
    %v1649 = vpop.f32.mrf.mxu0
    %v1650 = vpop.f32.mrf.mxu0
    %v1651 = vadd.f32 %v1403, %v1650
    %v1652 = vpop.f32.mrf.mxu0
    %1653 = vmatprep.mubr.bf16.mxu0 %v594
    %1654 = vmatmul.mubr.bf16.gmra.mxu0 %v1361
    %v1655 = vpop.f32.mrf.mxu0
    %v1656 = vadd.f32 %v1403, %v1655
    %v1657 = vpop.f32.mrf.mxu0
    %v1658 = vpop.f32.mrf.mxu0
    %v1659 = vadd.f32 %v1403, %v1658
    %v1660 = vpop.f32.mrf.mxu0
    %1661 = vmatprep.mubr.bf16.mxu0 %v595
    %1662 = vmatmul.mubr.bf16.gmra.mxu0 %v1362
    %v1663 = vpop.f32.mrf.mxu0
    %v1664 = vadd.f32 %v1403, %v1663
    %v1665 = vpop.f32.mrf.mxu0
    %v1666 = vpop.f32.mrf.mxu0
    %v1667 = vadd.f32 %v1403, %v1666
    %v1668 = vpop.f32.mrf.mxu0
    %1669 = vmatprep.mubr.bf16.mxu0 %v596
    %1670 = vmatmul.mubr.bf16.gmra.mxu0 %v1363
    %v1671 = vpop.f32.mrf.mxu0
    %v1672 = vadd.f32 %v1403, %v1671
    %v1673 = vpop.f32.mrf.mxu0
    %v1674 = vpop.f32.mrf.mxu0
    %v1675 = vadd.f32 %v1403, %v1674
    %v1676 = vpop.f32.mrf.mxu0
    %1677 = vmatprep.mubr.bf16.mxu0 %v597
    %1678 = vmatmul.mubr.bf16.gmra.mxu0 %v1364
    %v1679 = vpop.f32.mrf.mxu0
    %v1680 = vadd.f32 %v1403, %v1679
    %v1681 = vpop.f32.mrf.mxu0
    %v1682 = vpop.f32.mrf.mxu0
    %v1683 = vadd.f32 %v1403, %v1682
    %v1684 = vpop.f32.mrf.mxu0
    %1685 = vmatprep.mubr.bf16.mxu0 %v598
    %1686 = vmatmul.mubr.bf16.gmra.mxu0 %v1365
    %v1687 = vpop.f32.mrf.mxu0
    %v1688 = vadd.f32 %v1403, %v1687
    %v1689 = vpop.f32.mrf.mxu0
    %v1690 = vpop.f32.mrf.mxu0
    %v1691 = vadd.f32 %v1403, %v1690
    %v1692 = vpop.f32.mrf.mxu0
    %1693 = vdwg.mxu0
    %v1694 = vmax.f32 %v1536, 0.0
    %v1695 = vmax.f32 %v1539, 0.0
    %v1696 = vmax.f32 %v1544, 0.0
    %v1697 = vmax.f32 %v1547, 0.0
    %v1698 = vmax.f32 %v1552, 0.0
    %v1699 = vmax.f32 %v1555, 0.0
    %v1700 = vmax.f32 %v1560, 0.0
    %v1701 = vmax.f32 %v1563, 0.0
    %v1702 = vmax.f32 %v1568, 0.0
    %v1703 = vmax.f32 %v1571, 0.0
    %v1704 = vmax.f32 %v1576, 0.0
    %v1705 = vmax.f32 %v1579, 0.0
    %v1706 = vmax.f32 %v1584, 0.0
    %v1707 = vmax.f32 %v1587, 0.0
    %v1708 = vmax.f32 %v1592, 0.0
    %v1709 = vmax.f32 %v1595, 0.0
    %v1710 = vmax.f32 %v1600, 0.0
    %v1711 = vmax.f32 %v1603, 0.0
    %v1712 = vmax.f32 %v1608, 0.0
    %v1713 = vmax.f32 %v1611, 0.0
    %v1714 = vmax.f32 %v1616, 0.0
    %v1715 = vmax.f32 %v1619, 0.0
    %v1716 = vmax.f32 %v1624, 0.0
    %v1717 = vmax.f32 %v1627, 0.0
    %v1718 = vmax.f32 %v1632, 0.0
    %v1719 = vmax.f32 %v1635, 0.0
    %v1720 = vmax.f32 %v1640, 0.0
    %v1721 = vmax.f32 %v1643, 0.0
    %v1722 = vmax.f32 %v1648, 0.0
    %v1723 = vmax.f32 %v1651, 0.0
    %v1724 = vmax.f32 %v1656, 0.0
    %v1725 = vmax.f32 %v1659, 0.0
    %v1726 = vmax.f32 %v1664, 0.0
    %v1727 = vmax.f32 %v1667, 0.0
    %v1728 = vmax.f32 %v1672, 0.0
    %v1729 = vmax.f32 %v1675, 0.0
    %v1730 = vmax.f32 %v1680, 0.0
    %v1731 = vmax.f32 %v1683, 0.0
    %v1732 = vmax.f32 %v1688, 0.0
    %v1733 = vmax.f32 %v1691, 0.0
    %v1734 = vadd.f32 %v1694, %v341
    %v1735 = vadd.f32 %v1695, %v344
    %v1736 = vadd.f32 %v1696, %v349
    %v1737 = vadd.f32 %v1697, %v352
    %v1738 = vadd.f32 %v1698, %v357
    %v1739 = vadd.f32 %v1699, %v360
    %v1740 = vadd.f32 %v1700, %v365
    %v1741 = vadd.f32 %v1701, %v368
    %v1742 = vadd.f32 %v1702, %v373
    %v1743 = vadd.f32 %v1703, %v376
    %v1744 = vadd.f32 %v1704, %v381
    %v1745 = vadd.f32 %v1705, %v384
    %v1746 = vadd.f32 %v1706, %v389
    %v1747 = vadd.f32 %v1707, %v392
    %v1748 = vadd.f32 %v1708, %v397
    %v1749 = vadd.f32 %v1709, %v400
    %v1750 = vadd.f32 %v1710, %v405
    %v1751 = vadd.f32 %v1711, %v408
    %v1752 = vadd.f32 %v1712, %v413
    %v1753 = vadd.f32 %v1713, %v416
    %v1754 = vadd.f32 %v1714, %v421
    %v1755 = vadd.f32 %v1715, %v424
    %v1756 = vadd.f32 %v1716, %v429
    %v1757 = vadd.f32 %v1717, %v432
    %v1758 = vadd.f32 %v1718, %v437
    %v1759 = vadd.f32 %v1719, %v440
    %v1760 = vadd.f32 %v1720, %v445
    %v1761 = vadd.f32 %v1721, %v448
    %v1762 = vadd.f32 %v1722, %v453
    %v1763 = vadd.f32 %v1723, %v456
    %v1764 = vadd.f32 %v1724, %v461
    %v1765 = vadd.f32 %v1725, %v464
    %v1766 = vadd.f32 %v1726, %v469
    %v1767 = vadd.f32 %v1727, %v472
    %v1768 = vadd.f32 %v1728, %v477
    %v1769 = vadd.f32 %v1729, %v480
    %v1770 = vadd.f32 %v1730, %v485
    %v1771 = vadd.f32 %v1731, %v488
    %v1772 = vadd.f32 %v1732, %v493
    %v1773 = vadd.f32 %v1733, %v496
    %v1774 = vpack.c.bf16 %v1735, %v1734
    %v1775 = vpack.c.bf16 %v1737, %v1736
    %v1776 = vpack.c.bf16 %v1739, %v1738
    %v1777 = vpack.c.bf16 %v1741, %v1740
    %v1778 = vpack.c.bf16 %v1743, %v1742
    %v1779 = vpack.c.bf16 %v1745, %v1744
    %v1780 = vpack.c.bf16 %v1747, %v1746
    %v1781 = vpack.c.bf16 %v1749, %v1748
    %v1782 = vpack.c.bf16 %v1751, %v1750
    %v1783 = vpack.c.bf16 %v1753, %v1752
    %v1784 = vpack.c.bf16 %v1755, %v1754
    %v1785 = vpack.c.bf16 %v1757, %v1756
    %v1786 = vpack.c.bf16 %v1759, %v1758
    %v1787 = vpack.c.bf16 %v1761, %v1760
    %v1788 = vpack.c.bf16 %v1763, %v1762
    %v1789 = vpack.c.bf16 %v1765, %v1764
    %v1790 = vpack.c.bf16 %v1767, %v1766
    %v1791 = vpack.c.bf16 %v1769, %v1768
    %v1792 = vpack.c.bf16 %v1771, %v1770
    %v1793 = vpack.c.bf16 %v1773, %v1772
    %1794 = vmatprep.subr.bf16.mxu0 0
    %1795 = vmatpush1.bf16.msra.mxu0 %v1781
    %1796 = vmatprep.subr.bf16.mxu0 0
    %1797 = vmatpush1.bf16.msra.mxu0 %v1780
    %1798 = vmatprep.subr.bf16.mxu0 0
    %1799 = vmatpush1.bf16.msra.mxu0 %v1779
    %1800 = vmatprep.subr.bf16.mxu0 0
    %1801 = vmatpush1.bf16.msra.mxu0 %v1778
    %1802 = vmatprep.subr.bf16.mxu0 0
    %1803 = vmatpush1.bf16.msra.mxu0 %v1777
    %1804 = vmatprep.subr.bf16.mxu0 0
    %1805 = vmatpush1.bf16.msra.mxu0 %v1776
    %1806 = vmatprep.subr.bf16.mxu0 0
    %1807 = vmatpush1.bf16.msra.mxu0 %v1775
    %1808 = vmatprep.subr.bf16.mxu0 0
    %1809 = vmatpush1.bf16.msra.mxu0 %v1774
    %1810 = vmatprep.subr.bf16.mxu0 0
    %1811 = vmatpush2.bf16.msra.mxu0 %v1789
    %1812 = vmatprep.subr.bf16.mxu0 0
    %1813 = vmatpush2.bf16.msra.mxu0 %v1788
    %1814 = vmatprep.subr.bf16.mxu0 0
    %1815 = vmatpush2.bf16.msra.mxu0 %v1787
    %1816 = vmatprep.subr.bf16.mxu0 0
    %1817 = vmatpush2.bf16.msra.mxu0 %v1786
    %1818 = vmatprep.subr.bf16.mxu0 0
    %1819 = vmatpush2.bf16.msra.mxu0 %v1785
    %1820 = vmatprep.subr.bf16.mxu0 0
    %1821 = vmatpush2.bf16.msra.mxu0 %v1784
    %1822 = vmatprep.subr.bf16.mxu0 0
    %1823 = vmatpush2.bf16.msra.mxu0 %v1783
    %1824 = vmatprep.subr.bf16.mxu0 0
    %1825 = vmatpush2.bf16.msra.mxu0 %v1782
    %1826 = vmatprep.mubr.bf16.mxu0 %v800
    %1827 = vmatmul.mubr.bf16.gmra.mxu0 %v799
    %v1828 = vpop.f32.mrf.mxu0
    %v1829 = vadd.f32 0.0, %v1828
    %v1830 = vpop.f32.mrf.mxu0
    %v1831 = vpop.f32.mrf.mxu0
    %v1832 = vadd.f32 0.0, %v1831
    %v1833 = vpop.f32.mrf.mxu0
    %1834 = vmatprep.mubr.bf16.mxu0 %v803
    %1835 = vmatmul.mubr.bf16.gmra.mxu0 %v802
    %v1836 = vpop.f32.mrf.mxu0
    %v1837 = vadd.f32 0.0, %v1836
    %v1838 = vpop.f32.mrf.mxu0
    %v1839 = vpop.f32.mrf.mxu0
    %v1840 = vadd.f32 0.0, %v1839
    %v1841 = vpop.f32.mrf.mxu0
    %1842 = vmatprep.mubr.bf16.mxu0 %v806
    %1843 = vmatmul.mubr.bf16.gmra.mxu0 %v805
    %v1844 = vpop.f32.mrf.mxu0
    %v1845 = vadd.f32 0.0, %v1844
    %v1846 = vpop.f32.mrf.mxu0
    %v1847 = vpop.f32.mrf.mxu0
    %v1848 = vadd.f32 0.0, %v1847
    %v1849 = vpop.f32.mrf.mxu0
    %1850 = vmatprep.mubr.bf16.mxu0 %v809
    %1851 = vmatmul.mubr.bf16.gmra.mxu0 %v808
    %v1852 = vpop.f32.mrf.mxu0
    %v1853 = vadd.f32 0.0, %v1852
    %v1854 = vpop.f32.mrf.mxu0
    %v1855 = vpop.f32.mrf.mxu0
    %v1856 = vadd.f32 0.0, %v1855
    %v1857 = vpop.f32.mrf.mxu0
    %1858 = vmatprep.mubr.bf16.mxu0 %v812
    %1859 = vmatmul.mubr.bf16.gmra.mxu0 %v811
    %v1860 = vpop.f32.mrf.mxu0
    %v1861 = vadd.f32 0.0, %v1860
    %v1862 = vpop.f32.mrf.mxu0
    %v1863 = vpop.f32.mrf.mxu0
    %v1864 = vadd.f32 0.0, %v1863
    %v1865 = vpop.f32.mrf.mxu0
    %1866 = vmatprep.mubr.bf16.mxu0 %v815
    %1867 = vmatmul.mubr.bf16.gmra.mxu0 %v814
    %v1868 = vpop.f32.mrf.mxu0
    %v1869 = vadd.f32 0.0, %v1868
    %v1870 = vpop.f32.mrf.mxu0
    %v1871 = vpop.f32.mrf.mxu0
    %v1872 = vadd.f32 0.0, %v1871
    %v1873 = vpop.f32.mrf.mxu0
    %1874 = vmatprep.mubr.bf16.mxu0 %v818
    %1875 = vmatmul.mubr.bf16.gmra.mxu0 %v817
    %v1876 = vpop.f32.mrf.mxu0
    %v1877 = vadd.f32 0.0, %v1876
    %v1878 = vpop.f32.mrf.mxu0
    %v1879 = vpop.f32.mrf.mxu0
    %v1880 = vadd.f32 0.0, %v1879
    %v1881 = vpop.f32.mrf.mxu0
    %1882 = vmatprep.mubr.bf16.mxu0 %v821
    %1883 = vmatmul.mubr.bf16.gmra.mxu0 %v820
    %v1884 = vpop.f32.mrf.mxu0
    %v1885 = vadd.f32 0.0, %v1884
    %v1886 = vpop.f32.mrf.mxu0
    %v1887 = vpop.f32.mrf.mxu0
    %v1888 = vadd.f32 0.0, %v1887
    %v1889 = vpop.f32.mrf.mxu0
    %1890 = vmatprep.mubr.bf16.mxu0 %v824
    %1891 = vmatmul.mubr.bf16.gmra.mxu0 %v823
    %v1892 = vpop.f32.mrf.mxu0
    %v1893 = vadd.f32 0.0, %v1892
    %v1894 = vpop.f32.mrf.mxu0
    %v1895 = vpop.f32.mrf.mxu0
    %v1896 = vadd.f32 0.0, %v1895
    %v1897 = vpop.f32.mrf.mxu0
    %1898 = vmatprep.mubr.bf16.mxu0 %v827
    %1899 = vmatmul.mubr.bf16.gmra.mxu0 %v826
    %v1900 = vpop.f32.mrf.mxu0
    %v1901 = vadd.f32 0.0, %v1900
    %v1902 = vpop.f32.mrf.mxu0
    %v1903 = vpop.f32.mrf.mxu0
    %v1904 = vadd.f32 0.0, %v1903
    %v1905 = vpop.f32.mrf.mxu0
    %1906 = vmatprep.mubr.bf16.mxu0 %v830
    %1907 = vmatmul.mubr.bf16.gmra.mxu0 %v829
    %v1908 = vpop.f32.mrf.mxu0
    %v1909 = vadd.f32 0.0, %v1908
    %v1910 = vpop.f32.mrf.mxu0
    %v1911 = vpop.f32.mrf.mxu0
    %v1912 = vadd.f32 0.0, %v1911
    %v1913 = vpop.f32.mrf.mxu0
    %1914 = vmatprep.mubr.bf16.mxu0 %v833
    %1915 = vmatmul.mubr.bf16.gmra.mxu0 %v832
    %v1916 = vpop.f32.mrf.mxu0
    %v1917 = vadd.f32 0.0, %v1916
    %v1918 = vpop.f32.mrf.mxu0
    %v1919 = vpop.f32.mrf.mxu0
    %v1920 = vadd.f32 0.0, %v1919
    %v1921 = vpop.f32.mrf.mxu0
    %1922 = vmatprep.mubr.bf16.mxu0 %v836
    %1923 = vmatmul.mubr.bf16.gmra.mxu0 %v835
    %v1924 = vpop.f32.mrf.mxu0
    %v1925 = vadd.f32 0.0, %v1924
    %v1926 = vpop.f32.mrf.mxu0
    %v1927 = vpop.f32.mrf.mxu0
    %v1928 = vadd.f32 0.0, %v1927
    %v1929 = vpop.f32.mrf.mxu0
    %1930 = vmatprep.mubr.bf16.mxu0 %v839
    %1931 = vmatmul.mubr.bf16.gmra.mxu0 %v838
    %v1932 = vpop.f32.mrf.mxu0
    %v1933 = vadd.f32 0.0, %v1932
    %v1934 = vpop.f32.mrf.mxu0
    %v1935 = vpop.f32.mrf.mxu0
    %v1936 = vadd.f32 0.0, %v1935
    %v1937 = vpop.f32.mrf.mxu0
    %1938 = vmatprep.mubr.bf16.mxu0 %v842
    %1939 = vmatmul.mubr.bf16.gmra.mxu0 %v841
    %v1940 = vpop.f32.mrf.mxu0
    %v1941 = vadd.f32 0.0, %v1940
    %v1942 = vpop.f32.mrf.mxu0
    %v1943 = vpop.f32.mrf.mxu0
    %v1944 = vadd.f32 0.0, %v1943
    %v1945 = vpop.f32.mrf.mxu0
    %1946 = vmatprep.mubr.bf16.mxu0 %v845
    %1947 = vmatmul.mubr.bf16.gmra.mxu0 %v844
    %v1948 = vpop.f32.mrf.mxu0
    %v1949 = vadd.f32 0.0, %v1948
    %v1950 = vpop.f32.mrf.mxu0
    %v1951 = vpop.f32.mrf.mxu0
    %v1952 = vadd.f32 0.0, %v1951
    %v1953 = vpop.f32.mrf.mxu0
    %1954 = vmatprep.mubr.bf16.mxu0 %v848
    %1955 = vmatmul.mubr.bf16.gmra.mxu0 %v847
    %v1956 = vpop.f32.mrf.mxu0
    %v1957 = vadd.f32 0.0, %v1956
    %v1958 = vpop.f32.mrf.mxu0
    %v1959 = vpop.f32.mrf.mxu0
    %v1960 = vadd.f32 0.0, %v1959
    %v1961 = vpop.f32.mrf.mxu0
    %1962 = vmatprep.mubr.bf16.mxu0 %v851
    %1963 = vmatmul.mubr.bf16.gmra.mxu0 %v850
    %v1964 = vpop.f32.mrf.mxu0
    %v1965 = vadd.f32 0.0, %v1964
    %v1966 = vpop.f32.mrf.mxu0
    %v1967 = vpop.f32.mrf.mxu0
    %v1968 = vadd.f32 0.0, %v1967
    %v1969 = vpop.f32.mrf.mxu0
    %1970 = vmatprep.mubr.bf16.mxu0 %v854
    %1971 = vmatmul.mubr.bf16.gmra.mxu0 %v853
    %v1972 = vpop.f32.mrf.mxu0
    %v1973 = vadd.f32 0.0, %v1972
    %v1974 = vpop.f32.mrf.mxu0
    %v1975 = vpop.f32.mrf.mxu0
    %v1976 = vadd.f32 0.0, %v1975
    %v1977 = vpop.f32.mrf.mxu0
    %1978 = vmatprep.mubr.bf16.mxu0 %v857
    %1979 = vmatmul.mubr.bf16.gmra.mxu0 %v856
    %v1980 = vpop.f32.mrf.mxu0
    %v1981 = vadd.f32 0.0, %v1980
    %v1982 = vpop.f32.mrf.mxu0
    %v1983 = vpop.f32.mrf.mxu0
    %v1984 = vadd.f32 0.0, %v1983
    %v1985 = vpop.f32.mrf.mxu0
    %1986 = vdwg.mxu0
    %1987 = vmatprep.subr.bf16.mxu0 0
    %1988 = vmatpush1.bf16.msra.mxu0 0
    %1989 = vmatprep.subr.bf16.mxu0 0
    %1990 = vmatpush1.bf16.msra.mxu0 0
    %1991 = vmatprep.subr.bf16.mxu0 0
    %1992 = vmatpush1.bf16.msra.mxu0 0
    %1993 = vmatprep.subr.bf16.mxu0 0
    %1994 = vmatpush1.bf16.msra.mxu0 0
    %1995 = vmatprep.subr.bf16.mxu0 0
    %1996 = vmatpush1.bf16.msra.mxu0 %v1793
    %1997 = vmatprep.subr.bf16.mxu0 0
    %1998 = vmatpush1.bf16.msra.mxu0 %v1792
    %1999 = vmatprep.subr.bf16.mxu0 0
    %2000 = vmatpush1.bf16.msra.mxu0 %v1791
    %2001 = vmatprep.subr.bf16.mxu0 0
    %2002 = vmatpush1.bf16.msra.mxu0 %v1790
    %2003 = vmatprep.subr.bf16.mxu0 0
    %2004 = vmatpush2.bf16.msra.mxu0 0
    %2005 = vmatprep.subr.bf16.mxu0 0
    %2006 = vmatpush2.bf16.msra.mxu0 0
    %2007 = vmatprep.subr.bf16.mxu0 0
    %2008 = vmatpush2.bf16.msra.mxu0 0
    %2009 = vmatprep.subr.bf16.mxu0 0
    %2010 = vmatpush2.bf16.msra.mxu0 0
    %2011 = vmatprep.subr.bf16.mxu0 0
    %2012 = vmatpush2.bf16.msra.mxu0 0
    %2013 = vmatprep.subr.bf16.mxu0 0
    %2014 = vmatpush2.bf16.msra.mxu0 0
    %2015 = vmatprep.subr.bf16.mxu0 0
    %2016 = vmatpush2.bf16.msra.mxu0 0
    %2017 = vmatprep.subr.bf16.mxu0 0
    %2018 = vmatpush2.bf16.msra.mxu0 0
    %2019 = vmatprep.mubr.bf16.mxu0 0
    %2020 = vmatmul.mubr.bf16.gmra.mxu0 %v901
    %v2021 = vpop.f32.mrf.mxu0
    %v2022 = vadd.f32 %v1829, %v2021
    %v2023 = vpop.f32.mrf.mxu0
    %v2024 = vpop.f32.mrf.mxu0
    %v2025 = vadd.f32 %v1832, %v2024
    %v2026 = vpop.f32.mrf.mxu0
    %2027 = vmatprep.mubr.bf16.mxu0 0
    %2028 = vmatmul.mubr.bf16.gmra.mxu0 %v904
    %v2029 = vpop.f32.mrf.mxu0
    %v2030 = vadd.f32 %v1837, %v2029
    %v2031 = vpop.f32.mrf.mxu0
    %v2032 = vpop.f32.mrf.mxu0
    %v2033 = vadd.f32 %v1840, %v2032
    %v2034 = vpop.f32.mrf.mxu0
    %2035 = vmatprep.mubr.bf16.mxu0 0
    %2036 = vmatmul.mubr.bf16.gmra.mxu0 %v907
    %v2037 = vpop.f32.mrf.mxu0
    %v2038 = vadd.f32 %v1845, %v2037
    %v2039 = vpop.f32.mrf.mxu0
    %v2040 = vpop.f32.mrf.mxu0
    %v2041 = vadd.f32 %v1848, %v2040
    %v2042 = vpop.f32.mrf.mxu0
    %2043 = vmatprep.mubr.bf16.mxu0 0
    %2044 = vmatmul.mubr.bf16.gmra.mxu0 %v910
    %v2045 = vpop.f32.mrf.mxu0
    %v2046 = vadd.f32 %v1853, %v2045
    %v2047 = vpop.f32.mrf.mxu0
    %v2048 = vpop.f32.mrf.mxu0
    %v2049 = vadd.f32 %v1856, %v2048
    %v2050 = vpop.f32.mrf.mxu0
    %2051 = vmatprep.mubr.bf16.mxu0 0
    %2052 = vmatmul.mubr.bf16.gmra.mxu0 %v913
    %v2053 = vpop.f32.mrf.mxu0
    %v2054 = vadd.f32 %v1861, %v2053
    %v2055 = vpop.f32.mrf.mxu0
    %v2056 = vpop.f32.mrf.mxu0
    %v2057 = vadd.f32 %v1864, %v2056
    %v2058 = vpop.f32.mrf.mxu0
    %2059 = vmatprep.mubr.bf16.mxu0 0
    %2060 = vmatmul.mubr.bf16.gmra.mxu0 %v916
    %v2061 = vpop.f32.mrf.mxu0
    %v2062 = vadd.f32 %v1869, %v2061
    %v2063 = vpop.f32.mrf.mxu0
    %v2064 = vpop.f32.mrf.mxu0
    %v2065 = vadd.f32 %v1872, %v2064
    %v2066 = vpop.f32.mrf.mxu0
    %2067 = vmatprep.mubr.bf16.mxu0 0
    %2068 = vmatmul.mubr.bf16.gmra.mxu0 %v919
    %v2069 = vpop.f32.mrf.mxu0
    %v2070 = vadd.f32 %v1877, %v2069
    %v2071 = vpop.f32.mrf.mxu0
    %v2072 = vpop.f32.mrf.mxu0
    %v2073 = vadd.f32 %v1880, %v2072
    %v2074 = vpop.f32.mrf.mxu0
    %2075 = vmatprep.mubr.bf16.mxu0 0
    %2076 = vmatmul.mubr.bf16.gmra.mxu0 %v922
    %v2077 = vpop.f32.mrf.mxu0
    %v2078 = vadd.f32 %v1885, %v2077
    %v2079 = vpop.f32.mrf.mxu0
    %v2080 = vpop.f32.mrf.mxu0
    %v2081 = vadd.f32 %v1888, %v2080
    %v2082 = vpop.f32.mrf.mxu0
    %2083 = vmatprep.mubr.bf16.mxu0 0
    %2084 = vmatmul.mubr.bf16.gmra.mxu0 %v925
    %v2085 = vpop.f32.mrf.mxu0
    %v2086 = vadd.f32 %v1893, %v2085
    %v2087 = vpop.f32.mrf.mxu0
    %v2088 = vpop.f32.mrf.mxu0
    %v2089 = vadd.f32 %v1896, %v2088
    %v2090 = vpop.f32.mrf.mxu0
    %2091 = vmatprep.mubr.bf16.mxu0 0
    %2092 = vmatmul.mubr.bf16.gmra.mxu0 %v928
    %v2093 = vpop.f32.mrf.mxu0
    %v2094 = vadd.f32 %v1901, %v2093
    %v2095 = vpop.f32.mrf.mxu0
    %v2096 = vpop.f32.mrf.mxu0
    %v2097 = vadd.f32 %v1904, %v2096
    %v2098 = vpop.f32.mrf.mxu0
    %2099 = vmatprep.mubr.bf16.mxu0 0
    %2100 = vmatmul.mubr.bf16.gmra.mxu0 %v931
    %v2101 = vpop.f32.mrf.mxu0
    %v2102 = vadd.f32 %v1909, %v2101
    %v2103 = vpop.f32.mrf.mxu0
    %v2104 = vpop.f32.mrf.mxu0
    %v2105 = vadd.f32 %v1912, %v2104
    %v2106 = vpop.f32.mrf.mxu0
    %2107 = vmatprep.mubr.bf16.mxu0 0
    %2108 = vmatmul.mubr.bf16.gmra.mxu0 %v934
    %v2109 = vpop.f32.mrf.mxu0
    %v2110 = vadd.f32 %v1917, %v2109
    %v2111 = vpop.f32.mrf.mxu0
    %v2112 = vpop.f32.mrf.mxu0
    %v2113 = vadd.f32 %v1920, %v2112
    %v2114 = vpop.f32.mrf.mxu0
    %2115 = vmatprep.mubr.bf16.mxu0 0
    %2116 = vmatmul.mubr.bf16.gmra.mxu0 %v937
    %v2117 = vpop.f32.mrf.mxu0
    %v2118 = vadd.f32 %v1925, %v2117
    %v2119 = vpop.f32.mrf.mxu0
    %v2120 = vpop.f32.mrf.mxu0
    %v2121 = vadd.f32 %v1928, %v2120
    %v2122 = vpop.f32.mrf.mxu0
    %2123 = vmatprep.mubr.bf16.mxu0 0
    %2124 = vmatmul.mubr.bf16.gmra.mxu0 %v940
    %v2125 = vpop.f32.mrf.mxu0
    %v2126 = vadd.f32 %v1933, %v2125
    %v2127 = vpop.f32.mrf.mxu0
    %v2128 = vpop.f32.mrf.mxu0
    %v2129 = vadd.f32 %v1936, %v2128
    %v2130 = vpop.f32.mrf.mxu0
    %2131 = vmatprep.mubr.bf16.mxu0 0
    %2132 = vmatmul.mubr.bf16.gmra.mxu0 %v943
    %v2133 = vpop.f32.mrf.mxu0
    %v2134 = vadd.f32 %v1941, %v2133
    %v2135 = vpop.f32.mrf.mxu0
    %v2136 = vpop.f32.mrf.mxu0
    %v2137 = vadd.f32 %v1944, %v2136
    %v2138 = vpop.f32.mrf.mxu0
    %2139 = vmatprep.mubr.bf16.mxu0 0
    %2140 = vmatmul.mubr.bf16.gmra.mxu0 %v946
    %v2141 = vpop.f32.mrf.mxu0
    %v2142 = vadd.f32 %v1949, %v2141
    %v2143 = vpop.f32.mrf.mxu0
    %v2144 = vpop.f32.mrf.mxu0
    %v2145 = vadd.f32 %v1952, %v2144
    %v2146 = vpop.f32.mrf.mxu0
    %2147 = vmatprep.mubr.bf16.mxu0 0
    %2148 = vmatmul.mubr.bf16.gmra.mxu0 %v949
    %v2149 = vpop.f32.mrf.mxu0
    %v2150 = vadd.f32 %v1957, %v2149
    %v2151 = vpop.f32.mrf.mxu0
    %v2152 = vpop.f32.mrf.mxu0
    %v2153 = vadd.f32 %v1960, %v2152
    %v2154 = vpop.f32.mrf.mxu0
    %2155 = vmatprep.mubr.bf16.mxu0 0
    %2156 = vmatmul.mubr.bf16.gmra.mxu0 %v952
    %v2157 = vpop.f32.mrf.mxu0
    %v2158 = vadd.f32 %v1965, %v2157
    %v2159 = vpop.f32.mrf.mxu0
    %v2160 = vpop.f32.mrf.mxu0
    %v2161 = vadd.f32 %v1968, %v2160
    %v2162 = vpop.f32.mrf.mxu0
    %2163 = vmatprep.mubr.bf16.mxu0 0
    %2164 = vmatmul.mubr.bf16.gmra.mxu0 %v955
    %v2165 = vpop.f32.mrf.mxu0
    %v2166 = vadd.f32 %v1973, %v2165
    %v2167 = vpop.f32.mrf.mxu0
    %v2168 = vpop.f32.mrf.mxu0
    %v2169 = vadd.f32 %v1976, %v2168
    %v2170 = vpop.f32.mrf.mxu0
    %2171 = vmatprep.mubr.bf16.mxu0 0
    %2172 = vmatmul.mubr.bf16.gmra.mxu0 %v958
    %v2173 = vpop.f32.mrf.mxu0
    %v2174 = vadd.f32 %v1981, %v2173
    %v2175 = vpop.f32.mrf.mxu0
    %v2176 = vpop.f32.mrf.mxu0
    %v2177 = vadd.f32 %v1984, %v2176
    %v2178 = vpop.f32.mrf.mxu0
    %2179 = vdwg.mxu0
    %v2180 = vpack.c.bf16 %v2025, %v2022
    %v2181 = vpack.c.bf16 %v2033, %v2030
    %v2182 = vpack.c.bf16 %v2041, %v2038
    %v2183 = vpack.c.bf16 %v2049, %v2046
    %v2184 = vpack.c.bf16 %v2057, %v2054
    %v2185 = vpack.c.bf16 %v2065, %v2062
    %v2186 = vpack.c.bf16 %v2073, %v2070
    %v2187 = vpack.c.bf16 %v2081, %v2078
    %v2188 = vpack.c.bf16 %v2089, %v2086
    %v2189 = vpack.c.bf16 %v2097, %v2094
    %v2190 = vpack.c.bf16 %v2105, %v2102
    %v2191 = vpack.c.bf16 %v2113, %v2110
    %v2192 = vpack.c.bf16 %v2121, %v2118
    %v2193 = vpack.c.bf16 %v2129, %v2126
    %v2194 = vpack.c.bf16 %v2137, %v2134
    %v2195 = vpack.c.bf16 %v2145, %v2142
    %v2196 = vpack.c.bf16 %v2153, %v2150
    %v2197 = vpack.c.bf16 %v2161, %v2158
    %v2198 = vpack.c.bf16 %v2169, %v2166
    %v2199 = vpack.c.bf16 %v2177, %v2174
    %v2200 = vld [vmem:[#allocation7] sm:$0xf]
    %v2201 = vld [vmem:[#allocation7 + $0x4] sm:$0xf]
    %v2202 = vld [vmem:[#allocation7 + $0x8] sm:$0xf]
    %v2203 = vld [vmem:[#allocation7 + $0xc] sm:$0xf]
    %v2204 = vld [vmem:[#allocation7 + $0x10] sm:$0xf]
    %v2205 = vld [vmem:[#allocation7 + $0x14] sm:$0xf]
    %v2206 = vld [vmem:[#allocation7 + $0x18] sm:$0xf]
    %v2207 = vld [vmem:[#allocation7 + $0x1c] sm:$0xf]
    %v2208 = vld [vmem:[#allocation7 + $0x20] sm:$0xf]
    %v2209 = vld [vmem:[#allocation7 + $0x24] sm:$0xf]
    %v2210 = vld [vmem:[#allocation7 + $0x28] sm:$0xf]
    %v2211 = vld [vmem:[#allocation7 + $0x2c] sm:$0xf]
    %v2212 = vld [vmem:[#allocation7 + $0x30] sm:$0xf]
    %v2213 = vld [vmem:[#allocation7 + $0x34] sm:$0xf]
    %v2214 = vld [vmem:[#allocation7 + $0x38] sm:$0xf]
    %v2215 = vld [vmem:[#allocation7 + $0x3c] sm:$0xf]
    %v2216 = vld [vmem:[#allocation7 + $0x40] sm:$0xf]
    %v2217 = vld [vmem:[#allocation7 + $0x44] sm:$0xf]
    %v2218 = vld [vmem:[#allocation7 + $0x48] sm:$0xf]
    %v2219 = vld [vmem:[#allocation7 + $0x4c] sm:$0xf]
    %v2220 = vld [vmem:[#allocation7 + $0x50] sm:$0xf]
    %v2221 = vld [vmem:[#allocation7 + $0x54] sm:$0xf]
    %v2222 = vld [vmem:[#allocation7 + $0x58] sm:$0xf]
    %v2223 = vld [vmem:[#allocation7 + $0x5c] sm:$0xf]
    %v2224 = vld [vmem:[#allocation7 + $0x60] sm:$0xf]
    %v2225 = vld [vmem:[#allocation7 + $0x64] sm:$0xf]
    %v2226 = vld [vmem:[#allocation7 + $0x68] sm:$0xf]
    %v2227 = vld [vmem:[#allocation7 + $0x6c] sm:$0xf]
    %v2228 = vld [vmem:[#allocation7 + $0x70] sm:$0xf]
    %v2229 = vld [vmem:[#allocation7 + $0x74] sm:$0xf]
    %v2230 = vld [vmem:[#allocation7 + $0x78] sm:$0xf]
    %v2231 = vld [vmem:[#allocation7 + $0x7c] sm:$0xf]
    %v2232 = vld [vmem:[%s8] sm:$0x1]
    %v2234 = vlaneseq
    %v2235 = vshrl.u32 %v2234, 7
    %v2236 = vsub.s32 0, %v2235
    %v2237 = vrot.slane %v2232, %v2236
    %v2271 = vunpack.c.l.b16 %v2200
    %v2272 = vunpack.c.l.b16 %v2201
    %v2273 = vunpack.c.l.b16 %v2202
    %v2274 = vunpack.c.l.b16 %v2203
    %v2275 = vunpack.c.l.b16 %v2204
    %v2276 = vunpack.c.l.b16 %v2205
    %v2277 = vunpack.c.l.b16 %v2206
    %v2278 = vunpack.c.l.b16 %v2207
    %v2279 = vunpack.c.l.b16 %v2208
    %v2280 = vunpack.c.l.b16 %v2209
    %v2281 = vunpack.c.l.b16 %v2210
    %v2282 = vunpack.c.l.b16 %v2211
    %v2283 = vunpack.c.l.b16 %v2212
    %v2284 = vunpack.c.l.b16 %v2213
    %v2285 = vunpack.c.l.b16 %v2214
    %v2286 = vunpack.c.l.b16 %v2215
    %v2287 = vunpack.c.l.b16 %v2216
    %v2288 = vunpack.c.l.b16 %v2217
    %v2289 = vunpack.c.l.b16 %v2218
    %v2290 = vunpack.c.l.b16 %v2219
    %v2291 = vunpack.c.l.b16 %v2220
    %v2292 = vunpack.c.l.b16 %v2221
    %v2293 = vunpack.c.l.b16 %v2222
    %v2294 = vunpack.c.l.b16 %v2223
    %v2295 = vunpack.c.l.b16 %v2224
    %v2296 = vunpack.c.l.b16 %v2225
    %v2297 = vunpack.c.l.b16 %v2226
    %v2298 = vunpack.c.l.b16 %v2227
    %v2299 = vunpack.c.l.b16 %v2228
    %v2300 = vunpack.c.l.b16 %v2229
    %v2301 = vunpack.c.l.b16 %v2230
    %v2302 = vunpack.c.l.b16 %v2231
    %v2303 = vpack.c.b16 %v2272, %v2271
    %v2304 = vpack.c.b16 %v2274, %v2273
    %v2305 = vpack.c.b16 %v2276, %v2275
    %v2306 = vpack.c.b16 %v2278, %v2277
    %v2307 = vpack.c.b16 %v2280, %v2279
    %v2308 = vpack.c.b16 %v2282, %v2281
    %v2309 = vpack.c.b16 %v2284, %v2283
    %v2310 = vpack.c.b16 %v2286, %v2285
    %v2311 = vpack.c.b16 %v2288, %v2287
    %v2312 = vpack.c.b16 %v2290, %v2289
    %v2313 = vpack.c.b16 %v2292, %v2291
    %v2314 = vpack.c.b16 %v2294, %v2293
    %v2315 = vpack.c.b16 %v2296, %v2295
    %v2316 = vpack.c.b16 %v2298, %v2297
    %v2317 = vpack.c.b16 %v2300, %v2299
    %v2318 = vpack.c.b16 %v2302, %v2301
    %2335 = vmatprep.subr.bf16.mxu0 0
    %2336 = vmatpush1.bf16.msra.mxu0 %v2310
    %2337 = vmatprep.subr.bf16.mxu0 0
    %2338 = vmatpush1.bf16.msra.mxu0 %v2309
    %2339 = vmatprep.subr.bf16.mxu0 0
    %2340 = vmatpush1.bf16.msra.mxu0 %v2308
    %2341 = vmatprep.subr.bf16.mxu0 0
    %2342 = vmatpush1.bf16.msra.mxu0 %v2307
    %2343 = vmatprep.subr.bf16.mxu0 0
    %2344 = vmatpush1.bf16.msra.mxu0 %v2306
    %2345 = vmatprep.subr.bf16.mxu0 0
    %2346 = vmatpush1.bf16.msra.mxu0 %v2305
    %2347 = vmatprep.subr.bf16.mxu0 0
    %2348 = vmatpush1.bf16.msra.mxu0 %v2304
    %2349 = vmatprep.subr.bf16.mxu0 0
    %2350 = vmatpush1.bf16.msra.mxu0 %v2303
    %2351 = vmatprep.subr.bf16.mxu0 0
    %2352 = vmatpush2.bf16.msra.mxu0 %v2318
    %2353 = vmatprep.subr.bf16.mxu0 0
    %2354 = vmatpush2.bf16.msra.mxu0 %v2317
    %2355 = vmatprep.subr.bf16.mxu0 0
    %2356 = vmatpush2.bf16.msra.mxu0 %v2316
    %2357 = vmatprep.subr.bf16.mxu0 0
    %2358 = vmatpush2.bf16.msra.mxu0 %v2315
    %2359 = vmatprep.subr.bf16.mxu0 0
    %2360 = vmatpush2.bf16.msra.mxu0 %v2314
    %2361 = vmatprep.subr.bf16.mxu0 0
    %2362 = vmatpush2.bf16.msra.mxu0 %v2313
    %2363 = vmatprep.subr.bf16.mxu0 0
    %2364 = vmatpush2.bf16.msra.mxu0 %v2312
    %2365 = vmatprep.subr.bf16.mxu0 0
    %2366 = vmatpush2.bf16.msra.mxu0 %v2311
    %2367 = vmatprep.mubr.bf16.mxu0 %v1774
    %2368 = vmatmul.mubr.bf16.gmra.mxu0 %v2180
    %v2369 = vpop.f32.mrf.mxu0
    %v2370 = vadd.f32 %v2237, %v2369
    %v2371 = vpop.f32.mrf.mxu0
    %v2372 = vpop.f32.mrf.mxu0
    %v2373 = vadd.f32 %v2237, %v2372
    %v2374 = vpop.f32.mrf.mxu0
    %2375 = vmatprep.mubr.bf16.mxu0 %v1775
    %2376 = vmatmul.mubr.bf16.gmra.mxu0 %v2181
    %v2377 = vpop.f32.mrf.mxu0
    %v2378 = vadd.f32 %v2237, %v2377
    %v2379 = vpop.f32.mrf.mxu0
    %v2380 = vpop.f32.mrf.mxu0
    %v2381 = vadd.f32 %v2237, %v2380
    %v2382 = vpop.f32.mrf.mxu0
    %2383 = vmatprep.mubr.bf16.mxu0 %v1776
    %2384 = vmatmul.mubr.bf16.gmra.mxu0 %v2182
    %v2385 = vpop.f32.mrf.mxu0
    %v2386 = vadd.f32 %v2237, %v2385
    %v2387 = vpop.f32.mrf.mxu0
    %v2388 = vpop.f32.mrf.mxu0
    %v2389 = vadd.f32 %v2237, %v2388
    %v2390 = vpop.f32.mrf.mxu0
    %2391 = vmatprep.mubr.bf16.mxu0 %v1777
    %2392 = vmatmul.mubr.bf16.gmra.mxu0 %v2183
    %v2393 = vpop.f32.mrf.mxu0
    %v2394 = vadd.f32 %v2237, %v2393
    %v2395 = vpop.f32.mrf.mxu0
    %v2396 = vpop.f32.mrf.mxu0
    %v2397 = vadd.f32 %v2237, %v2396
    %v2398 = vpop.f32.mrf.mxu0
    %2399 = vmatprep.mubr.bf16.mxu0 %v1778
    %2400 = vmatmul.mubr.bf16.gmra.mxu0 %v2184
    %v2401 = vpop.f32.mrf.mxu0
    %v2402 = vadd.f32 %v2237, %v2401
    %v2403 = vpop.f32.mrf.mxu0
    %v2404 = vpop.f32.mrf.mxu0
    %v2405 = vadd.f32 %v2237, %v2404
    %v2406 = vpop.f32.mrf.mxu0
    %2407 = vmatprep.mubr.bf16.mxu0 %v1779
    %2408 = vmatmul.mubr.bf16.gmra.mxu0 %v2185
    %v2409 = vpop.f32.mrf.mxu0
    %v2410 = vadd.f32 %v2237, %v2409
    %v2411 = vpop.f32.mrf.mxu0
    %v2412 = vpop.f32.mrf.mxu0
    %v2413 = vadd.f32 %v2237, %v2412
    %v2414 = vpop.f32.mrf.mxu0
    %2415 = vmatprep.mubr.bf16.mxu0 %v1780
    %2416 = vmatmul.mubr.bf16.gmra.mxu0 %v2186
    %v2417 = vpop.f32.mrf.mxu0
    %v2418 = vadd.f32 %v2237, %v2417
    %v2419 = vpop.f32.mrf.mxu0
    %v2420 = vpop.f32.mrf.mxu0
    %v2421 = vadd.f32 %v2237, %v2420
    %v2422 = vpop.f32.mrf.mxu0
    %2423 = vmatprep.mubr.bf16.mxu0 %v1781
    %2424 = vmatmul.mubr.bf16.gmra.mxu0 %v2187
    %v2425 = vpop.f32.mrf.mxu0
    %v2426 = vadd.f32 %v2237, %v2425
    %v2427 = vpop.f32.mrf.mxu0
    %v2428 = vpop.f32.mrf.mxu0
    %v2429 = vadd.f32 %v2237, %v2428
    %v2430 = vpop.f32.mrf.mxu0
    %2431 = vmatprep.mubr.bf16.mxu0 %v1782
    %2432 = vmatmul.mubr.bf16.gmra.mxu0 %v2188
    %v2433 = vpop.f32.mrf.mxu0
    %v2434 = vadd.f32 %v2237, %v2433
    %v2435 = vpop.f32.mrf.mxu0
    %v2436 = vpop.f32.mrf.mxu0
    %v2437 = vadd.f32 %v2237, %v2436
    %v2438 = vpop.f32.mrf.mxu0
    %2439 = vmatprep.mubr.bf16.mxu0 %v1783
    %2440 = vmatmul.mubr.bf16.gmra.mxu0 %v2189
    %v2441 = vpop.f32.mrf.mxu0
    %v2442 = vadd.f32 %v2237, %v2441
    %v2443 = vpop.f32.mrf.mxu0
    %v2444 = vpop.f32.mrf.mxu0
    %v2445 = vadd.f32 %v2237, %v2444
    %v2446 = vpop.f32.mrf.mxu0
    %2447 = vmatprep.mubr.bf16.mxu0 %v1784
    %2448 = vmatmul.mubr.bf16.gmra.mxu0 %v2190
    %v2449 = vpop.f32.mrf.mxu0
    %v2450 = vadd.f32 %v2237, %v2449
    %v2451 = vpop.f32.mrf.mxu0
    %v2452 = vpop.f32.mrf.mxu0
    %v2453 = vadd.f32 %v2237, %v2452
    %v2454 = vpop.f32.mrf.mxu0
    %2455 = vmatprep.mubr.bf16.mxu0 %v1785
    %2456 = vmatmul.mubr.bf16.gmra.mxu0 %v2191
    %v2457 = vpop.f32.mrf.mxu0
    %v2458 = vadd.f32 %v2237, %v2457
    %v2459 = vpop.f32.mrf.mxu0
    %v2460 = vpop.f32.mrf.mxu0
    %v2461 = vadd.f32 %v2237, %v2460
    %v2462 = vpop.f32.mrf.mxu0
    %2463 = vmatprep.mubr.bf16.mxu0 %v1786
    %2464 = vmatmul.mubr.bf16.gmra.mxu0 %v2192
    %v2465 = vpop.f32.mrf.mxu0
    %v2466 = vadd.f32 %v2237, %v2465
    %v2467 = vpop.f32.mrf.mxu0
    %v2468 = vpop.f32.mrf.mxu0
    %v2469 = vadd.f32 %v2237, %v2468
    %v2470 = vpop.f32.mrf.mxu0
    %2471 = vmatprep.mubr.bf16.mxu0 %v1787
    %2472 = vmatmul.mubr.bf16.gmra.mxu0 %v2193
    %v2473 = vpop.f32.mrf.mxu0
    %v2474 = vadd.f32 %v2237, %v2473
    %v2475 = vpop.f32.mrf.mxu0
    %v2476 = vpop.f32.mrf.mxu0
    %v2477 = vadd.f32 %v2237, %v2476
    %v2478 = vpop.f32.mrf.mxu0
    %2479 = vmatprep.mubr.bf16.mxu0 %v1788
    %2480 = vmatmul.mubr.bf16.gmra.mxu0 %v2194
    %v2481 = vpop.f32.mrf.mxu0
    %v2482 = vadd.f32 %v2237, %v2481
    %v2483 = vpop.f32.mrf.mxu0
    %v2484 = vpop.f32.mrf.mxu0
    %v2485 = vadd.f32 %v2237, %v2484
    %v2486 = vpop.f32.mrf.mxu0
    %2487 = vmatprep.mubr.bf16.mxu0 %v1789
    %2488 = vmatmul.mubr.bf16.gmra.mxu0 %v2195
    %v2489 = vpop.f32.mrf.mxu0
    %v2490 = vadd.f32 %v2237, %v2489
    %v2491 = vpop.f32.mrf.mxu0
    %v2492 = vpop.f32.mrf.mxu0
    %v2493 = vadd.f32 %v2237, %v2492
    %v2494 = vpop.f32.mrf.mxu0
    %2495 = vmatprep.mubr.bf16.mxu0 %v1790
    %2496 = vmatmul.mubr.bf16.gmra.mxu0 %v2196
    %v2497 = vpop.f32.mrf.mxu0
    %v2498 = vadd.f32 %v2237, %v2497
    %v2499 = vpop.f32.mrf.mxu0
    %v2500 = vpop.f32.mrf.mxu0
    %v2501 = vadd.f32 %v2237, %v2500
    %v2502 = vpop.f32.mrf.mxu0
    %2503 = vmatprep.mubr.bf16.mxu0 %v1791
    %2504 = vmatmul.mubr.bf16.gmra.mxu0 %v2197
    %v2505 = vpop.f32.mrf.mxu0
    %v2506 = vadd.f32 %v2237, %v2505
    %v2507 = vpop.f32.mrf.mxu0
    %v2508 = vpop.f32.mrf.mxu0
    %v2509 = vadd.f32 %v2237, %v2508
    %v2510 = vpop.f32.mrf.mxu0
    %2511 = vmatprep.mubr.bf16.mxu0 %v1792
    %2512 = vmatmul.mubr.bf16.gmra.mxu0 %v2198
    %v2513 = vpop.f32.mrf.mxu0
    %v2514 = vadd.f32 %v2237, %v2513
    %v2515 = vpop.f32.mrf.mxu0
    %v2516 = vpop.f32.mrf.mxu0
    %v2517 = vadd.f32 %v2237, %v2516
    %v2518 = vpop.f32.mrf.mxu0
    %2519 = vmatprep.mubr.bf16.mxu0 %v1793
    %2520 = vmatmul.mubr.bf16.gmra.mxu0 %v2199
    %v2521 = vpop.f32.mrf.mxu0
    %v2522 = vadd.f32 %v2237, %v2521
    %v2523 = vpop.f32.mrf.mxu0
    %v2524 = vpop.f32.mrf.mxu0
    %v2525 = vadd.f32 %v2237, %v2524
    %v2526 = vpop.f32.mrf.mxu0
    %2527 = vdwg.mxu0
    %v2528 = vadd.f32 %v2370, %v1734
    %v2529 = vadd.f32 %v2373, %v1735
    %v2530 = vadd.f32 %v2378, %v1736
    %v2531 = vadd.f32 %v2381, %v1737
    %v2532 = vadd.f32 %v2386, %v1738
    %v2533 = vadd.f32 %v2389, %v1739
    %v2534 = vadd.f32 %v2394, %v1740
    %v2535 = vadd.f32 %v2397, %v1741
    %v2536 = vadd.f32 %v2402, %v1742
    %v2537 = vadd.f32 %v2405, %v1743
    %v2538 = vadd.f32 %v2410, %v1744
    %v2539 = vadd.f32 %v2413, %v1745
    %v2540 = vadd.f32 %v2418, %v1746
    %v2541 = vadd.f32 %v2421, %v1747
    %v2542 = vadd.f32 %v2426, %v1748
    %v2543 = vadd.f32 %v2429, %v1749
    %v2544 = vadd.f32 %v2434, %v1750
    %v2545 = vadd.f32 %v2437, %v1751
    %v2546 = vadd.f32 %v2442, %v1752
    %v2547 = vadd.f32 %v2445, %v1753
    %v2548 = vadd.f32 %v2450, %v1754
    %v2549 = vadd.f32 %v2453, %v1755
    %v2550 = vadd.f32 %v2458, %v1756
    %v2551 = vadd.f32 %v2461, %v1757
    %v2552 = vadd.f32 %v2466, %v1758
    %v2553 = vadd.f32 %v2469, %v1759
    %v2554 = vadd.f32 %v2474, %v1760
    %v2555 = vadd.f32 %v2477, %v1761
    %v2556 = vadd.f32 %v2482, %v1762
    %v2557 = vadd.f32 %v2485, %v1763
    %v2558 = vadd.f32 %v2490, %v1764
    %v2559 = vadd.f32 %v2493, %v1765
    %v2560 = vadd.f32 %v2498, %v1766
    %v2561 = vadd.f32 %v2501, %v1767
    %v2562 = vadd.f32 %v2506, %v1768
    %v2563 = vadd.f32 %v2509, %v1769
    %v2564 = vadd.f32 %v2514, %v1770
    %v2565 = vadd.f32 %v2517, %v1771
    %v2566 = vadd.f32 %v2522, %v1772
    %v2567 = vadd.f32 %v2525, %v1773
    %v2568 = vld [vmem:[%s2] sm:$0xff]
    %v2569 = vld [vmem:[%s2 + $0x8] sm:$0xff]
    %v2570 = vld [vmem:[%s2 + $0x10] sm:$0xff]
    %v2571 = vld [vmem:[%s2 + $0x18] sm:$0xff]
    %v2572 = vld [vmem:[%s2 + $0x20] sm:$0xff]
    %v2573 = vld [vmem:[%s2 + $0x28] sm:$0xff]
    %v2574 = vld [vmem:[%s2 + $0x30] sm:$0xff]
    %v2575 = vld [vmem:[%s2 + $0x38] sm:$0xff]
    %v2576 = vld [vmem:[%s2 + $0x40] sm:$0xff]
    %v2577 = vld [vmem:[%s2 + $0x48] sm:$0xff]
    %v2578 = vld [vmem:[%s2 + $0x50] sm:$0xff]
    %v2579 = vld [vmem:[%s2 + $0x58] sm:$0xff]
    %v2580 = vld [vmem:[%s2 + $0x60] sm:$0xff]
    %v2581 = vld [vmem:[%s2 + $0x68] sm:$0xff]
    %v2582 = vld [vmem:[%s2 + $0x70] sm:$0xff]
    %v2583 = vld [vmem:[%s2 + $0x78] sm:$0xff]
    %v2584 = vld [vmem:[%s2 + $0x80] sm:$0xff]
    %v2585 = vld [vmem:[%s2 + $0x88] sm:$0xff]
    %v2586 = vld [vmem:[%s2 + $0x90] sm:$0xff]
    %v2587 = vld [vmem:[%s2 + $0x98] sm:$0xff]
    %v2588 = vld [vmem:[%s2 + $0xa0] sm:$0xff]
    %v2589 = vld [vmem:[%s2 + $0xa8] sm:$0xff]
    %v2590 = vld [vmem:[%s2 + $0xb0] sm:$0xff]
    %v2591 = vld [vmem:[%s2 + $0xb8] sm:$0xff]
    %v2592 = vld [vmem:[%s2 + $0xc0] sm:$0xff]
    %v2593 = vld [vmem:[%s2 + $0xc8] sm:$0xff]
    %v2594 = vld [vmem:[%s2 + $0xd0] sm:$0xff]
    %v2595 = vld [vmem:[%s2 + $0xd8] sm:$0xff]
    %v2596 = vld [vmem:[%s2 + $0xe0] sm:$0xff]
    %v2597 = vld [vmem:[%s2 + $0xe8] sm:$0xff]
    %v2598 = vld [vmem:[%s2 + $0xf0] sm:$0xff]
    %v2599 = vld [vmem:[%s2 + $0xf8] sm:$0xff]
    %v2600 = vld [vmem:[%s2 + $0x100] sm:$0xff]
    %v2601 = vld [vmem:[%s2 + $0x108] sm:$0xff]
    %v2602 = vld [vmem:[%s2 + $0x110] sm:$0xff]
    %v2603 = vld [vmem:[%s2 + $0x118] sm:$0xff]
    %v2604 = vld [vmem:[%s2 + $0x120] sm:$0xff]
    %v2605 = vld [vmem:[%s2 + $0x128] sm:$0xff]
    %v2606 = vld [vmem:[%s2 + $0x130] sm:$0xff]
    %v2607 = vld [vmem:[%s2 + $0x138] sm:$0xff]
    %2608 = vxpose.xlu0.b32.start [1/16] %v2568, 128
    %2609 = vxpose.xlu0.b32.cont [2/16] %v2569, 128
    %2610 = vxpose.xlu0.b32.cont [3/16] %v2570, 128
    %2611 = vxpose.xlu0.b32.cont [4/16] %v2571, 128
    %2612 = vxpose.xlu0.b32.cont [5/16] %v2572, 128
    %2613 = vxpose.xlu0.b32.cont [6/16] %v2573, 128
    %2614 = vxpose.xlu0.b32.cont [7/16] %v2574, 128
    %2615 = vxpose.xlu0.b32.cont [8/16] %v2575, 128
    %2616 = vxpose.xlu0.b32.cont [9/16] %v2576, 128
    %2617 = vxpose.xlu0.b32.cont [10/16] %v2577, 128
    %2618 = vxpose.xlu0.b32.cont [11/16] %v2578, 128
    %2619 = vxpose.xlu0.b32.cont [12/16] %v2579, 128
    %2620 = vxpose.xlu0.b32.cont [13/16] %v2580, 128
    %2621 = vxpose.xlu0.b32.cont [14/16] %v2581, 128
    %2622 = vxpose.xlu0.b32.cont [15/16] %v2582, 128
    %2623 = vxpose.xlu0.b32.end [16/16] %v2583, 128
    %v2624 = vpop.trf.xlu0
    %v2625 = vpop.trf.xlu0
    %v2626 = vpop.trf.xlu0
    %v2627 = vpop.trf.xlu0
    %v2628 = vpop.trf.xlu0
    %v2629 = vpop.trf.xlu0
    %v2630 = vpop.trf.xlu0
    %v2631 = vpop.trf.xlu0
    %v2632 = vpop.trf.xlu0
    %v2633 = vpop.trf.xlu0
    %v2634 = vpop.trf.xlu0
    %v2635 = vpop.trf.xlu0
    %v2636 = vpop.trf.xlu0
    %v2637 = vpop.trf.xlu0
    %v2638 = vpop.trf.xlu0
    %v2639 = vpop.trf.xlu0
    %2640 = vxpose.xlu0.b32.start [1/16] %v2584, 128
    %2641 = vxpose.xlu0.b32.cont [2/16] %v2585, 128
    %2642 = vxpose.xlu0.b32.cont [3/16] %v2586, 128
    %2643 = vxpose.xlu0.b32.cont [4/16] %v2587, 128
    %2644 = vxpose.xlu0.b32.cont [5/16] %v2588, 128
    %2645 = vxpose.xlu0.b32.cont [6/16] %v2589, 128
    %2646 = vxpose.xlu0.b32.cont [7/16] %v2590, 128
    %2647 = vxpose.xlu0.b32.cont [8/16] %v2591, 128
    %2648 = vxpose.xlu0.b32.cont [9/16] %v2592, 128
    %2649 = vxpose.xlu0.b32.cont [10/16] %v2593, 128
    %2650 = vxpose.xlu0.b32.cont [11/16] %v2594, 128
    %2651 = vxpose.xlu0.b32.cont [12/16] %v2595, 128
    %2652 = vxpose.xlu0.b32.cont [13/16] %v2596, 128
    %2653 = vxpose.xlu0.b32.cont [14/16] %v2597, 128
    %2654 = vxpose.xlu0.b32.cont [15/16] %v2598, 128
    %2655 = vxpose.xlu0.b32.end [16/16] %v2599, 128
    %v2656 = vpop.trf.xlu0
    %v2657 = vpop.trf.xlu0
    %v2658 = vpop.trf.xlu0
    %v2659 = vpop.trf.xlu0
    %v2660 = vpop.trf.xlu0
    %v2661 = vpop.trf.xlu0
    %v2662 = vpop.trf.xlu0
    %v2663 = vpop.trf.xlu0
    %v2664 = vpop.trf.xlu0
    %v2665 = vpop.trf.xlu0
    %v2666 = vpop.trf.xlu0
    %v2667 = vpop.trf.xlu0
    %v2668 = vpop.trf.xlu0
    %v2669 = vpop.trf.xlu0
    %v2670 = vpop.trf.xlu0
    %v2671 = vpop.trf.xlu0
    %2672 = vxpose.xlu0.b32.start [1/16] %v2600, 128
    %2673 = vxpose.xlu0.b32.cont [2/16] %v2601, 128
    %2674 = vxpose.xlu0.b32.cont [3/16] %v2602, 128
    %2675 = vxpose.xlu0.b32.cont [4/16] %v2603, 128
    %2676 = vxpose.xlu0.b32.cont [5/16] %v2604, 128
    %2677 = vxpose.xlu0.b32.cont [6/16] %v2605, 128
    %2678 = vxpose.xlu0.b32.cont [7/16] %v2606, 128
    %2679 = vxpose.xlu0.b32.cont [8/16] %v2607, 128
    %2680 = vxpose.xlu0.b32.cont [9/16] 0.0, 128
    %2681 = vxpose.xlu0.b32.cont [10/16] 0.0, 128
    %2682 = vxpose.xlu0.b32.cont [11/16] 0.0, 128
    %2683 = vxpose.xlu0.b32.cont [12/16] 0.0, 128
    %2684 = vxpose.xlu0.b32.cont [13/16] 0.0, 128
    %2685 = vxpose.xlu0.b32.cont [14/16] 0.0, 128
    %2686 = vxpose.xlu0.b32.cont [15/16] 0.0, 128
    %2687 = vxpose.xlu0.b32.end [16/16] 0.0, 128
    %v2688 = vpop.trf.xlu0
    %v2689 = vpop.trf.xlu0
    %v2690 = vpop.trf.xlu0
    %v2691 = vpop.trf.xlu0
    %v2692 = vpop.trf.xlu0
    %v2693 = vpop.trf.xlu0
    %v2694 = vpop.trf.xlu0
    %v2695 = vpop.trf.xlu0
    %v2696 = vpop.trf.xlu0
    %v2697 = vpop.trf.xlu0
    %v2698 = vpop.trf.xlu0
    %v2699 = vpop.trf.xlu0
    %v2700 = vpop.trf.xlu0
    %v2701 = vpop.trf.xlu0
    %v2702 = vpop.trf.xlu0
    %v2703 = vpop.trf.xlu0
    %v2705 = vsel %vm899, %v2688, 0
    %2707 = vmatprep.subr.mxu0 0.0
    %2708 = vmatpush1.msra.mxu0 %v2543
    %2709 = vmatprep.subr.mxu0 0.0
    %2710 = vmatpush1.msra.mxu0 %v2542
    %2711 = vmatprep.subr.mxu0 0.0
    %2712 = vmatpush1.msra.mxu0 %v2541
    %2713 = vmatprep.subr.mxu0 0.0
    %2714 = vmatpush1.msra.mxu0 %v2540
    %2715 = vmatprep.subr.mxu0 0.0
    %2716 = vmatpush1.msra.mxu0 %v2539
    %2717 = vmatprep.subr.mxu0 0.0
    %2718 = vmatpush1.msra.mxu0 %v2538
    %2719 = vmatprep.subr.mxu0 0.0
    %2720 = vmatpush1.msra.mxu0 %v2537
    %2721 = vmatprep.subr.mxu0 0.0
    %2722 = vmatpush1.msra.mxu0 %v2536
    %2723 = vmatprep.subr.mxu0 0.0
    %2724 = vmatpush1.msra.mxu0 %v2535
    %2725 = vmatprep.subr.mxu0 0.0
    %2726 = vmatpush1.msra.mxu0 %v2534
    %2727 = vmatprep.subr.mxu0 0.0
    %2728 = vmatpush1.msra.mxu0 %v2533
    %2729 = vmatprep.subr.mxu0 0.0
    %2730 = vmatpush1.msra.mxu0 %v2532
    %2731 = vmatprep.subr.mxu0 0.0
    %2732 = vmatpush1.msra.mxu0 %v2531
    %2733 = vmatprep.subr.mxu0 0.0
    %2734 = vmatpush1.msra.mxu0 %v2530
    %2735 = vmatprep.subr.mxu0 0.0
    %2736 = vmatpush1.msra.mxu0 %v2529
    %2737 = vmatprep.subr.mxu0 0.0
    %2738 = vmatpush1.msra.mxu0 %v2528
    %2739 = vmatprep.subr.mxu0 0.0
    %2740 = vmatpush2.msra.mxu0 %v2559
    %2741 = vmatprep.subr.mxu0 0.0
    %2742 = vmatpush2.msra.mxu0 %v2558
    %2743 = vmatprep.subr.mxu0 0.0
    %2744 = vmatpush2.msra.mxu0 %v2557
    %2745 = vmatprep.subr.mxu0 0.0
    %2746 = vmatpush2.msra.mxu0 %v2556
    %2747 = vmatprep.subr.mxu0 0.0
    %2748 = vmatpush2.msra.mxu0 %v2555
    %2749 = vmatprep.subr.mxu0 0.0
    %2750 = vmatpush2.msra.mxu0 %v2554
    %2751 = vmatprep.subr.mxu0 0.0
    %2752 = vmatpush2.msra.mxu0 %v2553
    %2753 = vmatprep.subr.mxu0 0.0
    %2754 = vmatpush2.msra.mxu0 %v2552
    %2755 = vmatprep.subr.mxu0 0.0
    %2756 = vmatpush2.msra.mxu0 %v2551
    %2757 = vmatprep.subr.mxu0 0.0
    %2758 = vmatpush2.msra.mxu0 %v2550
    %2759 = vmatprep.subr.mxu0 0.0
    %2760 = vmatpush2.msra.mxu0 %v2549
    %2761 = vmatprep.subr.mxu0 0.0
    %2762 = vmatpush2.msra.mxu0 %v2548
    %2763 = vmatprep.subr.mxu0 0.0
    %2764 = vmatpush2.msra.mxu0 %v2547
    %2765 = vmatprep.subr.mxu0 0.0
    %2766 = vmatpush2.msra.mxu0 %v2546
    %2767 = vmatprep.subr.mxu0 0.0
    %2768 = vmatpush2.msra.mxu0 %v2545
    %2769 = vmatprep.subr.mxu0 0.0
    %2770 = vmatpush2.msra.mxu0 %v2544
    %2771 = vmatprep.mubr.f32.mxu0 %v2656
    %2772 = vmatmul.mubr.f32.gmra.mxu0 %v2624
    %v2773 = vpop.f32.mrf.mxu0
    %v2774 = vadd.f32 0.0, %v2773
    %v2775 = vpop.f32.mrf.mxu0
    %2776 = vdwg.mxu0
    %2777 = vmatprep.subr.mxu0 0.0
    %2778 = vmatpush1.msra.mxu0 0.0
    %2779 = vmatprep.subr.mxu0 0.0
    %2780 = vmatpush1.msra.mxu0 0.0
    %2781 = vmatprep.subr.mxu0 0.0
    %2782 = vmatpush1.msra.mxu0 0.0
    %2783 = vmatprep.subr.mxu0 0.0
    %2784 = vmatpush1.msra.mxu0 0.0
    %2785 = vmatprep.subr.mxu0 0.0
    %2786 = vmatpush1.msra.mxu0 0.0
    %2787 = vmatprep.subr.mxu0 0.0
    %2788 = vmatpush1.msra.mxu0 0.0
    %2789 = vmatprep.subr.mxu0 0.0
    %2790 = vmatpush1.msra.mxu0 0.0
    %2791 = vmatprep.subr.mxu0 0.0
    %2792 = vmatpush1.msra.mxu0 0.0
    %2793 = vmatprep.subr.mxu0 0.0
    %2794 = vmatpush1.msra.mxu0 %v2567
    %2795 = vmatprep.subr.mxu0 0.0
    %2796 = vmatpush1.msra.mxu0 %v2566
    %2797 = vmatprep.subr.mxu0 0.0
    %2798 = vmatpush1.msra.mxu0 %v2565
    %2799 = vmatprep.subr.mxu0 0.0
    %2800 = vmatpush1.msra.mxu0 %v2564
    %2801 = vmatprep.subr.mxu0 0.0
    %2802 = vmatpush1.msra.mxu0 %v2563
    %2803 = vmatprep.subr.mxu0 0.0
    %2804 = vmatpush1.msra.mxu0 %v2562
    %2805 = vmatprep.subr.mxu0 0.0
    %2806 = vmatpush1.msra.mxu0 %v2561
    %2807 = vmatprep.subr.mxu0 0.0
    %2808 = vmatpush1.msra.mxu0 %v2560
    %2809 = vmatprep.subr.mxu0 0.0
    %2810 = vmatpush2.msra.mxu0 0.0
    %2811 = vmatprep.subr.mxu0 0.0
    %2812 = vmatpush2.msra.mxu0 0.0
    %2813 = vmatprep.subr.mxu0 0.0
    %2814 = vmatpush2.msra.mxu0 0.0
    %2815 = vmatprep.subr.mxu0 0.0
    %2816 = vmatpush2.msra.mxu0 0.0
    %2817 = vmatprep.subr.mxu0 0.0
    %2818 = vmatpush2.msra.mxu0 0.0
    %2819 = vmatprep.subr.mxu0 0.0
    %2820 = vmatpush2.msra.mxu0 0.0
    %2821 = vmatprep.subr.mxu0 0.0
    %2822 = vmatpush2.msra.mxu0 0.0
    %2823 = vmatprep.subr.mxu0 0.0
    %2824 = vmatpush2.msra.mxu0 0.0
    %2825 = vmatprep.subr.mxu0 0.0
    %2826 = vmatpush2.msra.mxu0 0.0
    %2827 = vmatprep.subr.mxu0 0.0
    %2828 = vmatpush2.msra.mxu0 0.0
    %2829 = vmatprep.subr.mxu0 0.0
    %2830 = vmatpush2.msra.mxu0 0.0
    %2831 = vmatprep.subr.mxu0 0.0
    %2832 = vmatpush2.msra.mxu0 0.0
    %2833 = vmatprep.subr.mxu0 0.0
    %2834 = vmatpush2.msra.mxu0 0.0
    %2835 = vmatprep.subr.mxu0 0.0
    %2836 = vmatpush2.msra.mxu0 0.0
    %2837 = vmatprep.subr.mxu0 0.0
    %2838 = vmatpush2.msra.mxu0 0.0
    %2839 = vmatprep.subr.mxu0 0.0
    %2840 = vmatpush2.msra.mxu0 0.0
    %2841 = vmatprep.mubr.f32.mxu0 0.0
    %2842 = vmatmul.mubr.f32.gmra.mxu0 %v2705
    %v2843 = vpop.f32.mrf.mxu0
    %v2844 = vadd.f32 %v2774, %v2843
    %v2845 = vpop.f32.mrf.mxu0
    %2846 = vdwg.mxu0
    %2847 = vst [vmem:[#allocation8] sm:$0xff] %v2844
    // Predicated region
    $region50: #{tpu_custom_call.1} parent=1 // pred_check
      _
    $region51: #{tpu_custom_call.1} parent=1 // pred_check_branch
      %2849 = sbr.rel (0) target = $region53
    $region52: #{tpu_custom_call.1} parent=1 // pred_region
      %s2851 = ssub.s32 128, 128
      %2852 = vsyncadd [#allocation4], %s2851
      %s2854 = sshll.u32 [#allocation8], 4
      %s2855 = int_to_ptr.vmem [resolvable:$true] %s2854
      %2857 = dma.vmem_to_hbm [thread:$0]  %s2855, 128, %s9, [#allocation4]
    $region53: #{tpu_custom_call.1} parent=1 // pred_fallthru
      _
    // Predicated region
    $region54: #{tpu_custom_call.1} parent=1 // pred_check
      _
    $region55: #{tpu_custom_call.1} parent=1 // pred_check_branch
      %2859 = sbr.rel (0) target = $region57
    $region56: #{tpu_custom_call.1} parent=1 // pred_region
      %2860 = dma.done [#allocation4], 128
    $region57: #{tpu_custom_call.1} parent=1 // pred_fallthru
      _
    %2861 = vsyncpa [#allocation3], 1
    %2862 = vsyncpa [#allocation6], 1
    %2863 = vsyncpa [#allocation4], 1

</llo_original>
